<compile_context>
chip_gen: v7x
topology: tpu7x:2x2x1
jax: 0.10.0
libtpu: 0.0.40
codegen_flags: <defaults>
</compile_context>

<pallas_src>
import math
import jax
import jax.numpy as jnp
from jax.experimental import pallas as pl
from jax.experimental.pallas import tpu as pltpu

# ----------------------- model hyper-parameters (small) ----------------------
B = 2            # batch
S = 8            # sequence length (<= BERT.max_length = 512)
H = 32           # hidden size
NH = 2           # attention heads
DH = H // NH     # head dim
FF = 64          # intermediate (FFN) size
L = 2            # transformer layers
VOCAB = 64       # vocab size
NUM_LABELS = 5   # token-classification labels
C_PAD = 128      # classifier output padded to a full lane width
LN_EPS = 1e-12   # BERT layernorm eps


# ------------------------------ in-kernel helpers -----------------------------
def _ln(x, g, b):
    mu = jnp.mean(x, axis=-1, keepdims=True)
    var = jnp.mean((x - mu) ** 2, axis=-1, keepdims=True)
    return (x - mu) * jax.lax.rsqrt(var + LN_EPS) * g + b


def _bf16_dot(a_f32, w_bf16):
    # bf16 MXU operands, f32 accumulation.
    return jnp.dot(a_f32.astype(jnp.bfloat16), w_bf16,
                   preferred_element_type=jnp.float32)


# ------------------------------- fused BERT kernel ----------------------------
def _bert_kernel(emb_ref, eg_ref, eb_ref,
                 wqkv_ref, bqkv_ref, wo_ref, bo_ref, ln1g_ref, ln1b_ref,
                 w1_ref, b1_ref, w2_ref, b2_ref, ln2g_ref, ln2b_ref,
                 wc_ref, bc_ref, lab_ref,
                 logits_ref, loss_ref):
    # One grid step == one batch element (independent end-to-end).
    # ---- embedding layernorm ----
    x = _ln(emb_ref[...], eg_ref[...], eb_ref[...])              # [S, H] f32

    scale = 1.0 / math.sqrt(DH)

    # ---- transformer layers, statically unrolled (L is tiny) ----
    for l in range(L):
        # fused QKV projection: one MXU pass, 3H-wide output
        qkv = _bf16_dot(x, wqkv_ref[l]) + bqkv_ref[l]            # [S, 3H] f32
        qkv_bf = qkv.astype(jnp.bfloat16)                        # cast once
        wo_l = wo_ref[l]                                         # [H, H] bf16

        attn = bo_ref[l]                                         # [1, H] f32 bias
        # NOTE(synk): at H=32 the head slices land mid-vreg; at real H=768
        #             they become 128-lane aligned automatically.
        for h in range(NH):                                      # NH=2, unrolled
            q_h = qkv_bf[:, 0 * H + h * DH: 0 * H + (h + 1) * DH]   # [S, DH]
            k_h = qkv_bf[:, 1 * H + h * DH: 1 * H + (h + 1) * DH]   # [S, DH]
            v_h = qkv_bf[:, 2 * H + h * DH: 2 * H + (h + 1) * DH]   # [S, DH]
            # Q·K^T without a materialized transpose (contract dim 1 with 1).
            s = jax.lax.dot_general(
                q_h, k_h, (((1,), (1,)), ((), ())),
                preferred_element_type=jnp.float32) * scale      # [S, S] f32
            m = jnp.max(s, axis=-1, keepdims=True)
            e = jnp.exp(s - m)
            p = e / jnp.sum(e, axis=-1, keepdims=True)           # exact divide
            ctx_h = jnp.dot(p.astype(jnp.bfloat16), v_h,
                            preferred_element_type=jnp.float32)  # [S, DH]
            # Fold the head directly into the output projection: no concat,
            # identical MXU work (K split over heads).
            attn = attn + jnp.dot(ctx_h.astype(jnp.bfloat16),
                                  wo_l[h * DH:(h + 1) * DH, :],
                                  preferred_element_type=jnp.float32)

        x = _ln(x + attn, ln1g_ref[l], ln1b_ref[l])

        # feed-forward
        # TODO(synk): HF BERT uses exact erf GELU; tanh approximation here.
        h1 = jax.nn.gelu(_bf16_dot(x, w1_ref[l]) + b1_ref[l], approximate=True)
        ffn = _bf16_dot(h1, w2_ref[l]) + b2_ref[l]
        x = _ln(x + ffn, ln2g_ref[l], ln2b_ref[l])

    # ---- classifier + softmax cross-entropy (per-batch partial loss) ----
    logits = _bf16_dot(x, wc_ref[...]) + bc_ref[...]             # [S, C_PAD] f32
    logits_ref[...] = logits                                     # lane-dense store
    col = jax.lax.broadcasted_iota(jnp.int32, (S, C_PAD), 1)
    z = jnp.where(col < NUM_LABELS, logits, -1e30)               # mask padded classes
    m = jnp.max(z, axis=-1, keepdims=True)
    lse = jnp.log(jnp.sum(jnp.exp(z - m), axis=-1, keepdims=True)) + m
    onehot = (col == lab_ref[...]).astype(jnp.float32)           # iota == label column
    nll = -jnp.sum(onehot * (z - lse), axis=-1, keepdims=True)   # [S, 1]
    # per-batch sum; the mean over all B*S tokens is taken in the wrapper.
    loss_ref[...] = jnp.sum(nll, axis=0, keepdims=True)          # [1, 1]


# ------------------------------ parameter setup -------------------------------
def init_params(key):
    std = 0.02
    ks = iter(jax.random.split(key, 8))

    def nrm(shape, dtype=jnp.float32):
        return (std * jax.random.normal(next(ks), shape)).astype(dtype)

    wc_raw = nrm((H, NUM_LABELS))
    wc = jnp.zeros((H, C_PAD), jnp.float32).at[:, :NUM_LABELS].set(wc_raw)

    return {
        "word_emb": nrm((VOCAB, H)),
        "pos_emb": nrm((S, H)),
        "type_emb": nrm((2, H)),
        "emb_ln_g": jnp.ones((1, H), jnp.float32),
        "emb_ln_b": jnp.zeros((1, H), jnp.float32),
        # stacked per-layer weights; MXU operands stored in bf16
        "wqkv": nrm((L, H, 3 * H), jnp.bfloat16),
        "bqkv": jnp.zeros((L, 1, 3 * H), jnp.float32),
        "wo": nrm((L, H, H), jnp.bfloat16),
        "bo": jnp.zeros((L, 1, H), jnp.float32),
        "ln1_g": jnp.ones((L, 1, H), jnp.float32),
        "ln1_b": jnp.zeros((L, 1, H), jnp.float32),
        "w1": nrm((L, H, FF), jnp.bfloat16),
        "b1": jnp.zeros((L, 1, FF), jnp.float32),
        "w2": nrm((L, FF, H), jnp.bfloat16),
        "b2": jnp.zeros((L, 1, H), jnp.float32),
        "ln2_g": jnp.ones((L, 1, H), jnp.float32),
        "ln2_b": jnp.zeros((L, 1, H), jnp.float32),
        # classifier padded to 128 lanes (zeros beyond NUM_LABELS)
        "wc": wc.astype(jnp.bfloat16),
        "bc": jnp.zeros((1, C_PAD), jnp.float32),
    }


# --------------------------------- forward ------------------------------------
def bert_forward(params, text, label):
    """Mirrors BERT.forward(text, label) -> (loss, logits)."""
    Bb, Ss = text.shape

    # embedding gather + sum is XLA glue; everything else is one Pallas kernel.
    emb = (jnp.take(params["word_emb"], text, axis=0)
           + params["pos_emb"][None, :Ss, :]
           + params["type_emb"][0][None, None, :]).astype(jnp.float32)   # [B, S, H]
    labels = label.astype(jnp.int32).reshape(Bb, Ss, 1)                  # [B, S, 1]

    def bcast(shape):
        # full-array block, same for every batch step (stays VMEM-resident)
        return pl.BlockSpec(shape, lambda b, _n=len(shape): (0,) * _n)

    def per_batch(trailing):
        # leading batch dim squeezed; indexed by the grid's batch axis
        return pl.BlockSpec((None,) + trailing,
                            lambda b, _t=trailing: (b,) + (0,) * len(_t))

    logits_pad, loss_parts = pl.pallas_call(
        _bert_kernel,
        out_shape=(jax.ShapeDtypeStruct((Bb, Ss, C_PAD), jnp.float32),
                   jax.ShapeDtypeStruct((Bb, 1, 1), jnp.float32)),
        grid=(Bb,),
        in_specs=[
            per_batch((Ss, H)),                 # emb
            bcast((1, H)), bcast((1, H)),       # emb layernorm
            bcast((L, H, 3 * H)), bcast((L, 1, 3 * H)),   # wqkv, bqkv
            bcast((L, H, H)), bcast((L, 1, H)),            # wo, bo
            bcast((L, 1, H)), bcast((L, 1, H)),            # ln1 g/b
            bcast((L, H, FF)), bcast((L, 1, FF)),          # w1, b1
            bcast((L, FF, H)), bcast((L, 1, H)),           # w2, b2
            bcast((L, 1, H)), bcast((L, 1, H)),            # ln2 g/b
            bcast((H, C_PAD)), bcast((1, C_PAD)),          # classifier
            per_batch((Ss, 1)),                            # labels
        ],
        out_specs=(per_batch((Ss, C_PAD)), per_batch((1, 1))),
        compiler_params=pltpu.CompilerParams(
            dimension_semantics=("parallel",)),   # batches independent (v7x: 2 TCs)
    )(emb, params["emb_ln_g"], params["emb_ln_b"],
      params["wqkv"], params["bqkv"], params["wo"], params["bo"],
      params["ln1_g"], params["ln1_b"],
      params["w1"], params["b1"], params["w2"], params["b2"],
      params["ln2_g"], params["ln2_b"],
      params["wc"], params["bc"], labels)

    logits = logits_pad[:, :, :NUM_LABELS]                    # [B, S, NUM_LABELS]
    loss = jnp.sum(loss_parts) / float(Bb * Ss)               # mean over all tokens
    return loss, logits


# ----------------------------------- main --------------------------------------
if __name__ == "__main__":
    key = jax.random.PRNGKey(0)
    kp, kt, kl = jax.random.split(key, 3)

    params = init_params(kp)
    text = jax.random.randint(kt, (B, S), 0, VOCAB, dtype=jnp.int32)
    label = jax.random.randint(kl, (B, S), 0, NUM_LABELS, dtype=jnp.int32)

    loss, logits = jax.jit(bert_forward)(params, text, label)
    jax.block_until_ready((loss, logits))

    assert logits.shape == (B, S, NUM_LABELS)
    assert loss.shape == ()
    assert bool(jnp.isfinite(loss))
    print("KERNEL_OK")
</pallas_src>

<mosaic_0001>
module attributes {stable_mosaic.version = 11 : i64} {
  func.func @_bert_kernel(%arg0: i32, %arg1: memref<1x8x32xf32, #tpu.memory_space<vmem>>, %arg2: memref<1x32xf32, #tpu.memory_space<vmem>>, %arg3: memref<1x32xf32, #tpu.memory_space<vmem>>, %arg4: memref<2x32x96xbf16, #tpu.memory_space<vmem>>, %arg5: memref<2x1x96xf32, #tpu.memory_space<vmem>>, %arg6: memref<2x32x32xbf16, #tpu.memory_space<vmem>>, %arg7: memref<2x1x32xf32, #tpu.memory_space<vmem>>, %arg8: memref<2x1x32xf32, #tpu.memory_space<vmem>>, %arg9: memref<2x1x32xf32, #tpu.memory_space<vmem>>, %arg10: memref<2x32x64xbf16, #tpu.memory_space<vmem>>, %arg11: memref<2x1x64xf32, #tpu.memory_space<vmem>>, %arg12: memref<2x64x32xbf16, #tpu.memory_space<vmem>>, %arg13: memref<2x1x32xf32, #tpu.memory_space<vmem>>, %arg14: memref<2x1x32xf32, #tpu.memory_space<vmem>>, %arg15: memref<2x1x32xf32, #tpu.memory_space<vmem>>, %arg16: memref<32x128xbf16, #tpu.memory_space<vmem>>, %arg17: memref<1x128xf32, #tpu.memory_space<vmem>>, %arg18: memref<1x8x1xi32, #tpu.memory_space<vmem>>, %arg19: memref<1x8x128xf32, #tpu.memory_space<vmem>>, %arg20: memref<1x1x1xf32, #tpu.memory_space<vmem>>) attributes {dimension_semantics = [#tpu.dimension_semantics<parallel>], iteration_bounds = array<i64: 2>, scalar_prefetch = 0 : i64, scratch_operands = 0 : i64, tpu.core_type = #tpu.core_type<tc>, window_params = [{transform_indices = @transform_0, window_bounds = array<i64: 1, 8, 32>}, {pipeline_mode = #tpu.pipeline_mode<synchronous>, transform_indices = @transform_1, window_bounds = array<i64: 1, 32>}, {pipeline_mode = #tpu.pipeline_mode<synchronous>, transform_indices = @transform_2, window_bounds = array<i64: 1, 32>}, {pipeline_mode = #tpu.pipeline_mode<synchronous>, transform_indices = @transform_3, window_bounds = array<i64: 2, 32, 96>}, {pipeline_mode = #tpu.pipeline_mode<synchronous>, transform_indices = @transform_4, window_bounds = array<i64: 2, 1, 96>}, {pipeline_mode = #tpu.pipeline_mode<synchronous>, transform_indices = @transform_5, window_bounds = array<i64: 2, 32, 32>}, {pipeline_mode = #tpu.pipeline_mode<synchronous>, transform_indices = @transform_6, window_bounds = array<i64: 2, 1, 32>}, {pipeline_mode = #tpu.pipeline_mode<synchronous>, transform_indices = @transform_7, window_bounds = array<i64: 2, 1, 32>}, {pipeline_mode = #tpu.pipeline_mode<synchronous>, transform_indices = @transform_8, window_bounds = array<i64: 2, 1, 32>}, {pipeline_mode = #tpu.pipeline_mode<synchronous>, transform_indices = @transform_9, window_bounds = array<i64: 2, 32, 64>}, {pipeline_mode = #tpu.pipeline_mode<synchronous>, transform_indices = @transform_10, window_bounds = array<i64: 2, 1, 64>}, {pipeline_mode = #tpu.pipeline_mode<synchronous>, transform_indices = @transform_11, window_bounds = array<i64: 2, 64, 32>}, {pipeline_mode = #tpu.pipeline_mode<synchronous>, transform_indices = @transform_12, window_bounds = array<i64: 2, 1, 32>}, {pipeline_mode = #tpu.pipeline_mode<synchronous>, transform_indices = @transform_13, window_bounds = array<i64: 2, 1, 32>}, {pipeline_mode = #tpu.pipeline_mode<synchronous>, transform_indices = @transform_14, window_bounds = array<i64: 2, 1, 32>}, {pipeline_mode = #tpu.pipeline_mode<synchronous>, transform_indices = @transform_15, window_bounds = array<i64: 32, 128>}, {pipeline_mode = #tpu.pipeline_mode<synchronous>, transform_indices = @transform_16, window_bounds = array<i64: 1, 128>}, {transform_indices = @transform_17, window_bounds = array<i64: 1, 8, 1>}, {transform_indices = @transform_18, window_bounds = array<i64: 1, 8, 128>}, {transform_indices = @transform_19, window_bounds = array<i64: 1, 1, 1>}]} {
    %c0 = arith.constant 0 : index
    %c0_0 = arith.constant 0 : index
    %c0_1 = arith.constant 0 : index
    %0 = vector.load %arg1[%c0, %c0_0, %c0_1] : memref<1x8x32xf32, #tpu.memory_space<vmem>>, vector<1x8x32xf32>
    %1 = vector.shape_cast %0 : vector<1x8x32xf32> to vector<8x32xf32>
    %c0_2 = arith.constant 0 : index
    %c0_3 = arith.constant 0 : index
    %2 = vector.load %arg2[%c0_2, %c0_3] : memref<1x32xf32, #tpu.memory_space<vmem>>, vector<1x32xf32>
    %c0_4 = arith.constant 0 : index
    %c0_5 = arith.constant 0 : index
    %3 = vector.load %arg3[%c0_4, %c0_5] : memref<1x32xf32, #tpu.memory_space<vmem>>, vector<1x32xf32>
    %cst = arith.constant dense<0.000000e+00> : vector<8xf32>
    %4 = vector.multi_reduction <add>, %1, %cst [1] : vector<8x32xf32> to vector<8xf32>
    %5 = vector.shape_cast %4 : vector<8xf32> to vector<8x1xf32>
    %cst_6 = arith.constant 3.200000e+01 : f32
    %6 = vector.broadcast %cst_6 : f32 to vector<8x1xf32>
    %7 = arith.divf %5, %6 : vector<8x1xf32>
    %8 = vector.broadcast %7 : vector<8x1xf32> to vector<8x32xf32>
    %9 = arith.subf %1, %8 : vector<8x32xf32>
    %10 = arith.mulf %9, %9 : vector<8x32xf32>
    %cst_7 = arith.constant dense<0.000000e+00> : vector<8xf32>
    %11 = vector.multi_reduction <add>, %10, %cst_7 [1] : vector<8x32xf32> to vector<8xf32>
    %12 = vector.shape_cast %11 : vector<8xf32> to vector<8x1xf32>
    %cst_8 = arith.constant 3.200000e+01 : f32
    %13 = vector.broadcast %cst_8 : f32 to vector<8x1xf32>
    %14 = arith.divf %12, %13 : vector<8x1xf32>
    %15 = vector.broadcast %7 : vector<8x1xf32> to vector<8x32xf32>
    %16 = arith.subf %1, %15 : vector<8x32xf32>
    %cst_9 = arith.constant 9.99999996E-13 : f32
    %17 = vector.broadcast %cst_9 : f32 to vector<8x1xf32>
    %18 = arith.addf %14, %17 : vector<8x1xf32>
    %19 = math.rsqrt %18 : vector<8x1xf32>
    %20 = vector.broadcast %19 : vector<8x1xf32> to vector<8x32xf32>
    %21 = arith.mulf %16, %20 : vector<8x32xf32>
    %22 = vector.broadcast %2 : vector<1x32xf32> to vector<8x32xf32>
    %23 = arith.mulf %21, %22 : vector<8x32xf32>
    %24 = vector.broadcast %3 : vector<1x32xf32> to vector<8x32xf32>
    %25 = arith.addf %23, %24 : vector<8x32xf32>
    %c0_10 = arith.constant 0 : index
    %c0_11 = arith.constant 0 : index
    %c0_12 = arith.constant 0 : index
    %26 = vector.load %arg4[%c0_10, %c0_11, %c0_12] : memref<2x32x96xbf16, #tpu.memory_space<vmem>>, vector<1x32x96xbf16>
    %27 = vector.shape_cast %26 : vector<1x32x96xbf16> to vector<32x96xbf16>
    %28 = arith.truncf %25 : vector<8x32xf32> to vector<8x32xbf16>
    %cst_13 = arith.constant dense<0.000000e+00> : vector<8x96xf32>
    %29 = tpu.matmul %28, %27, %cst_13 {dimension_numbers = #tpu.dot_dimension_numbers<[1], [0], [0], [1], [0, 0, 1, 1], [], []>} : vector<8x32xbf16>, vector<32x96xbf16>, vector<8x96xf32> -> vector<8x96xf32>
    %c0_14 = arith.constant 0 : index
    %c0_15 = arith.constant 0 : index
    %c0_16 = arith.constant 0 : index
    %30 = vector.load %arg5[%c0_14, %c0_15, %c0_16] : memref<2x1x96xf32, #tpu.memory_space<vmem>>, vector<1x1x96xf32>
    %31 = vector.shape_cast %30 : vector<1x1x96xf32> to vector<1x96xf32>
    %32 = vector.broadcast %31 : vector<1x96xf32> to vector<8x96xf32>
    %33 = arith.addf %29, %32 : vector<8x96xf32>
    %34 = arith.truncf %33 : vector<8x96xf32> to vector<8x96xbf16>
    %c0_17 = arith.constant 0 : index
    %c0_18 = arith.constant 0 : index
    %c0_19 = arith.constant 0 : index
    %35 = vector.load %arg6[%c0_17, %c0_18, %c0_19] : memref<2x32x32xbf16, #tpu.memory_space<vmem>>, vector<1x32x32xbf16>
    %36 = vector.shape_cast %35 : vector<1x32x32xbf16> to vector<32x32xbf16>
    %c0_20 = arith.constant 0 : index
    %c0_21 = arith.constant 0 : index
    %c0_22 = arith.constant 0 : index
    %37 = vector.load %arg7[%c0_20, %c0_21, %c0_22] : memref<2x1x32xf32, #tpu.memory_space<vmem>>, vector<1x1x32xf32>
    %38 = vector.shape_cast %37 : vector<1x1x32xf32> to vector<1x32xf32>
    %39 = vector.extract_strided_slice %34 {offsets = [0, 0], sizes = [8, 16], strides = [1, 1]} : vector<8x96xbf16> to vector<8x16xbf16>
    %40 = vector.extract_strided_slice %34 {offsets = [0, 32], sizes = [8, 16], strides = [1, 1]} : vector<8x96xbf16> to vector<8x16xbf16>
    %41 = vector.extract_strided_slice %34 {offsets = [0, 64], sizes = [8, 16], strides = [1, 1]} : vector<8x96xbf16> to vector<8x16xbf16>
    %cst_23 = arith.constant dense<0.000000e+00> : vector<8x8xf32>
    %42 = tpu.matmul %39, %40, %cst_23 {dimension_numbers = #tpu.dot_dimension_numbers<[1], [1], [0], [0], [0, 0, 1, 0], [], []>} : vector<8x16xbf16>, vector<8x16xbf16>, vector<8x8xf32> -> vector<8x8xf32>
    %cst_24 = arith.constant 2.500000e-01 : f32
    %43 = vector.broadcast %cst_24 : f32 to vector<8x8xf32>
    %44 = arith.mulf %42, %43 : vector<8x8xf32>
    %cst_25 = arith.constant dense<0xFF800000> : vector<8xf32>
    %45 = vector.multi_reduction <maximumf>, %44, %cst_25 [1] : vector<8x8xf32> to vector<8xf32>
    %46 = vector.shape_cast %45 : vector<8xf32> to vector<8x1xf32>
    %47 = vector.broadcast %46 : vector<8x1xf32> to vector<8x8xf32>
    %48 = arith.subf %44, %47 : vector<8x8xf32>
    %49 = math.exp %48 : vector<8x8xf32>
    %cst_26 = arith.constant dense<0.000000e+00> : vector<8xf32>
    %50 = vector.multi_reduction <add>, %49, %cst_26 [1] : vector<8x8xf32> to vector<8xf32>
    %51 = vector.shape_cast %50 : vector<8xf32> to vector<8x1xf32>
    %52 = vector.broadcast %51 : vector<8x1xf32> to vector<8x8xf32>
    %53 = arith.divf %49, %52 : vector<8x8xf32>
    %54 = arith.truncf %53 : vector<8x8xf32> to vector<8x8xbf16>
    %cst_27 = arith.constant dense<0.000000e+00> : vector<8x16xf32>
    %55 = tpu.matmul %54, %41, %cst_27 {dimension_numbers = #tpu.dot_dimension_numbers<[1], [0], [0], [1], [0, 0, 1, 1], [], []>} : vector<8x8xbf16>, vector<8x16xbf16>, vector<8x16xf32> -> vector<8x16xf32>
    %56 = arith.truncf %55 : vector<8x16xf32> to vector<8x16xbf16>
    %57 = vector.extract_strided_slice %36 {offsets = [0, 0], sizes = [16, 32], strides = [1, 1]} : vector<32x32xbf16> to vector<16x32xbf16>
    %cst_28 = arith.constant dense<0.000000e+00> : vector<8x32xf32>
    %58 = tpu.matmul %56, %57, %cst_28 {dimension_numbers = #tpu.dot_dimension_numbers<[1], [0], [0], [1], [0, 0, 1, 1], [], []>} : vector<8x16xbf16>, vector<16x32xbf16>, vector<8x32xf32> -> vector<8x32xf32>
    %59 = vector.broadcast %38 : vector<1x32xf32> to vector<8x32xf32>
    %60 = arith.addf %59, %58 : vector<8x32xf32>
    %61 = vector.extract_strided_slice %34 {offsets = [0, 16], sizes = [8, 16], strides = [1, 1]} : vector<8x96xbf16> to vector<8x16xbf16>
    %62 = vector.extract_strided_slice %34 {offsets = [0, 48], sizes = [8, 16], strides = [1, 1]} : vector<8x96xbf16> to vector<8x16xbf16>
    %63 = vector.extract_strided_slice %34 {offsets = [0, 80], sizes = [8, 16], strides = [1, 1]} : vector<8x96xbf16> to vector<8x16xbf16>
    %cst_29 = arith.constant dense<0.000000e+00> : vector<8x8xf32>
    %64 = tpu.matmul %61, %62, %cst_29 {dimension_numbers = #tpu.dot_dimension_numbers<[1], [1], [0], [0], [0, 0, 1, 0], [], []>} : vector<8x16xbf16>, vector<8x16xbf16>, vector<8x8xf32> -> vector<8x8xf32>
    %cst_30 = arith.constant 2.500000e-01 : f32
    %65 = vector.broadcast %cst_30 : f32 to vector<8x8xf32>
    %66 = arith.mulf %64, %65 : vector<8x8xf32>
    %cst_31 = arith.constant dense<0xFF800000> : vector<8xf32>
    %67 = vector.multi_reduction <maximumf>, %66, %cst_31 [1] : vector<8x8xf32> to vector<8xf32>
    %68 = vector.shape_cast %67 : vector<8xf32> to vector<8x1xf32>
    %69 = vector.broadcast %68 : vector<8x1xf32> to vector<8x8xf32>
    %70 = arith.subf %66, %69 : vector<8x8xf32>
    %71 = math.exp %70 : vector<8x8xf32>
    %cst_32 = arith.constant dense<0.000000e+00> : vector<8xf32>
    %72 = vector.multi_reduction <add>, %71, %cst_32 [1] : vector<8x8xf32> to vector<8xf32>
    %73 = vector.shape_cast %72 : vector<8xf32> to vector<8x1xf32>
    %74 = vector.broadcast %73 : vector<8x1xf32> to vector<8x8xf32>
    %75 = arith.divf %71, %74 : vector<8x8xf32>
    %76 = arith.truncf %75 : vector<8x8xf32> to vector<8x8xbf16>
    %cst_33 = arith.constant dense<0.000000e+00> : vector<8x16xf32>
    %77 = tpu.matmul %76, %63, %cst_33 {dimension_numbers = #tpu.dot_dimension_numbers<[1], [0], [0], [1], [0, 0, 1, 1], [], []>} : vector<8x8xbf16>, vector<8x16xbf16>, vector<8x16xf32> -> vector<8x16xf32>
    %78 = arith.truncf %77 : vector<8x16xf32> to vector<8x16xbf16>
    %79 = vector.extract_strided_slice %36 {offsets = [16, 0], sizes = [16, 32], strides = [1, 1]} : vector<32x32xbf16> to vector<16x32xbf16>
    %cst_34 = arith.constant dense<0.000000e+00> : vector<8x32xf32>
    %80 = tpu.matmul %78, %79, %cst_34 {dimension_numbers = #tpu.dot_dimension_numbers<[1], [0], [0], [1], [0, 0, 1, 1], [], []>} : vector<8x16xbf16>, vector<16x32xbf16>, vector<8x32xf32> -> vector<8x32xf32>
    %81 = arith.addf %60, %80 : vector<8x32xf32>
    %82 = arith.addf %25, %81 : vector<8x32xf32>
    %c0_35 = arith.constant 0 : index
    %c0_36 = arith.constant 0 : index
    %c0_37 = arith.constant 0 : index
    %83 = vector.load %arg8[%c0_35, %c0_36, %c0_37] : memref<2x1x32xf32, #tpu.memory_space<vmem>>, vector<1x1x32xf32>
    %84 = vector.shape_cast %83 : vector<1x1x32xf32> to vector<1x32xf32>
    %c0_38 = arith.constant 0 : index
    %c0_39 = arith.constant 0 : index
    %c0_40 = arith.constant 0 : index
    %85 = vector.load %arg9[%c0_38, %c0_39, %c0_40] : memref<2x1x32xf32, #tpu.memory_space<vmem>>, vector<1x1x32xf32>
    %86 = vector.shape_cast %85 : vector<1x1x32xf32> to vector<1x32xf32>
    %cst_41 = arith.constant dense<0.000000e+00> : vector<8xf32>
    %87 = vector.multi_reduction <add>, %82, %cst_41 [1] : vector<8x32xf32> to vector<8xf32>
    %88 = vector.shape_cast %87 : vector<8xf32> to vector<8x1xf32>
    %cst_42 = arith.constant 3.200000e+01 : f32
    %89 = vector.broadcast %cst_42 : f32 to vector<8x1xf32>
    %90 = arith.divf %88, %89 : vector<8x1xf32>
    %91 = vector.broadcast %90 : vector<8x1xf32> to vector<8x32xf32>
    %92 = arith.subf %82, %91 : vector<8x32xf32>
    %93 = arith.mulf %92, %92 : vector<8x32xf32>
    %cst_43 = arith.constant dense<0.000000e+00> : vector<8xf32>
    %94 = vector.multi_reduction <add>, %93, %cst_43 [1] : vector<8x32xf32> to vector<8xf32>
    %95 = vector.shape_cast %94 : vector<8xf32> to vector<8x1xf32>
    %cst_44 = arith.constant 3.200000e+01 : f32
    %96 = vector.broadcast %cst_44 : f32 to vector<8x1xf32>
    %97 = arith.divf %95, %96 : vector<8x1xf32>
    %98 = vector.broadcast %90 : vector<8x1xf32> to vector<8x32xf32>
    %99 = arith.subf %82, %98 : vector<8x32xf32>
    %cst_45 = arith.constant 9.99999996E-13 : f32
    %100 = vector.broadcast %cst_45 : f32 to vector<8x1xf32>
    %101 = arith.addf %97, %100 : vector<8x1xf32>
    %102 = math.rsqrt %101 : vector<8x1xf32>
    %103 = vector.broadcast %102 : vector<8x1xf32> to vector<8x32xf32>
    %104 = arith.mulf %99, %103 : vector<8x32xf32>
    %105 = vector.broadcast %84 : vector<1x32xf32> to vector<8x32xf32>
    %106 = arith.mulf %104, %105 : vector<8x32xf32>
    %107 = vector.broadcast %86 : vector<1x32xf32> to vector<8x32xf32>
    %108 = arith.addf %106, %107 : vector<8x32xf32>
    %c0_46 = arith.constant 0 : index
    %c0_47 = arith.constant 0 : index
    %c0_48 = arith.constant 0 : index
    %109 = vector.load %arg10[%c0_46, %c0_47, %c0_48] : memref<2x32x64xbf16, #tpu.memory_space<vmem>>, vector<1x32x64xbf16>
    %110 = vector.shape_cast %109 : vector<1x32x64xbf16> to vector<32x64xbf16>
    %111 = arith.truncf %108 : vector<8x32xf32> to vector<8x32xbf16>
    %cst_49 = arith.constant dense<0.000000e+00> : vector<8x64xf32>
    %112 = tpu.matmul %111, %110, %cst_49 {dimension_numbers = #tpu.dot_dimension_numbers<[1], [0], [0], [1], [0, 0, 1, 1], [], []>} : vector<8x32xbf16>, vector<32x64xbf16>, vector<8x64xf32> -> vector<8x64xf32>
    %c0_50 = arith.constant 0 : index
    %c0_51 = arith.constant 0 : index
    %c0_52 = arith.constant 0 : index
    %113 = vector.load %arg11[%c0_50, %c0_51, %c0_52] : memref<2x1x64xf32, #tpu.memory_space<vmem>>, vector<1x1x64xf32>
    %114 = vector.shape_cast %113 : vector<1x1x64xf32> to vector<1x64xf32>
    %115 = vector.broadcast %114 : vector<1x64xf32> to vector<8x64xf32>
    %116 = arith.addf %112, %115 : vector<8x64xf32>
    %117 = arith.mulf %116, %116 : vector<8x64xf32>
    %118 = arith.mulf %116, %117 : vector<8x64xf32>
    %cst_53 = arith.constant 4.471500e-02 : f32
    %119 = vector.broadcast %cst_53 : f32 to vector<8x64xf32>
    %120 = arith.mulf %119, %118 : vector<8x64xf32>
    %121 = arith.addf %116, %120 : vector<8x64xf32>
    %cst_54 = arith.constant 0.797884583 : f32
    %122 = vector.broadcast %cst_54 : f32 to vector<8x64xf32>
    %123 = arith.mulf %122, %121 : vector<8x64xf32>
    %124 = math.tanh %123 : vector<8x64xf32>
    %cst_55 = arith.constant 1.000000e+00 : f32
    %125 = vector.broadcast %cst_55 : f32 to vector<8x64xf32>
    %126 = arith.addf %125, %124 : vector<8x64xf32>
    %cst_56 = arith.constant 5.000000e-01 : f32
    %127 = vector.broadcast %cst_56 : f32 to vector<8x64xf32>
    %128 = arith.mulf %127, %126 : vector<8x64xf32>
    %129 = arith.mulf %116, %128 : vector<8x64xf32>
    %c0_57 = arith.constant 0 : index
    %c0_58 = arith.constant 0 : index
    %c0_59 = arith.constant 0 : index
    %130 = vector.load %arg12[%c0_57, %c0_58, %c0_59] : memref<2x64x32xbf16, #tpu.memory_space<vmem>>, vector<1x64x32xbf16>
    %131 = vector.shape_cast %130 : vector<1x64x32xbf16> to vector<64x32xbf16>
    %132 = arith.truncf %129 : vector<8x64xf32> to vector<8x64xbf16>
    %cst_60 = arith.constant dense<0.000000e+00> : vector<8x32xf32>
    %133 = tpu.matmul %132, %131, %cst_60 {dimension_numbers = #tpu.dot_dimension_numbers<[1], [0], [0], [1], [0, 0, 1, 1], [], []>} : vector<8x64xbf16>, vector<64x32xbf16>, vector<8x32xf32> -> vector<8x32xf32>
    %c0_61 = arith.constant 0 : index
    %c0_62 = arith.constant 0 : index
    %c0_63 = arith.constant 0 : index
    %134 = vector.load %arg13[%c0_61, %c0_62, %c0_63] : memref<2x1x32xf32, #tpu.memory_space<vmem>>, vector<1x1x32xf32>
    %135 = vector.shape_cast %134 : vector<1x1x32xf32> to vector<1x32xf32>
    %136 = vector.broadcast %135 : vector<1x32xf32> to vector<8x32xf32>
    %137 = arith.addf %133, %136 : vector<8x32xf32>
    %138 = arith.addf %108, %137 : vector<8x32xf32>
    %c0_64 = arith.constant 0 : index
    %c0_65 = arith.constant 0 : index
    %c0_66 = arith.constant 0 : index
    %139 = vector.load %arg14[%c0_64, %c0_65, %c0_66] : memref<2x1x32xf32, #tpu.memory_space<vmem>>, vector<1x1x32xf32>
    %140 = vector.shape_cast %139 : vector<1x1x32xf32> to vector<1x32xf32>
    %c0_67 = arith.constant 0 : index
    %c0_68 = arith.constant 0 : index
    %c0_69 = arith.constant 0 : index
    %141 = vector.load %arg15[%c0_67, %c0_68, %c0_69] : memref<2x1x32xf32, #tpu.memory_space<vmem>>, vector<1x1x32xf32>
    %142 = vector.shape_cast %141 : vector<1x1x32xf32> to vector<1x32xf32>
    %cst_70 = arith.constant dense<0.000000e+00> : vector<8xf32>
    %143 = vector.multi_reduction <add>, %138, %cst_70 [1] : vector<8x32xf32> to vector<8xf32>
    %144 = vector.shape_cast %143 : vector<8xf32> to vector<8x1xf32>
    %cst_71 = arith.constant 3.200000e+01 : f32
    %145 = vector.broadcast %cst_71 : f32 to vector<8x1xf32>
    %146 = arith.divf %144, %145 : vector<8x1xf32>
    %147 = vector.broadcast %146 : vector<8x1xf32> to vector<8x32xf32>
    %148 = arith.subf %138, %147 : vector<8x32xf32>
    %149 = arith.mulf %148, %148 : vector<8x32xf32>
    %cst_72 = arith.constant dense<0.000000e+00> : vector<8xf32>
    %150 = vector.multi_reduction <add>, %149, %cst_72 [1] : vector<8x32xf32> to vector<8xf32>
    %151 = vector.shape_cast %150 : vector<8xf32> to vector<8x1xf32>
    %cst_73 = arith.constant 3.200000e+01 : f32
    %152 = vector.broadcast %cst_73 : f32 to vector<8x1xf32>
    %153 = arith.divf %151, %152 : vector<8x1xf32>
    %154 = vector.broadcast %146 : vector<8x1xf32> to vector<8x32xf32>
    %155 = arith.subf %138, %154 : vector<8x32xf32>
    %cst_74 = arith.constant 9.99999996E-13 : f32
    %156 = vector.broadcast %cst_74 : f32 to vector<8x1xf32>
    %157 = arith.addf %153, %156 : vector<8x1xf32>
    %158 = math.rsqrt %157 : vector<8x1xf32>
    %159 = vector.broadcast %158 : vector<8x1xf32> to vector<8x32xf32>
    %160 = arith.mulf %155, %159 : vector<8x32xf32>
    %161 = vector.broadcast %140 : vector<1x32xf32> to vector<8x32xf32>
    %162 = arith.mulf %160, %161 : vector<8x32xf32>
    %163 = vector.broadcast %142 : vector<1x32xf32> to vector<8x32xf32>
    %164 = arith.addf %162, %163 : vector<8x32xf32>
    %c1 = arith.constant 1 : index
    %c0_75 = arith.constant 0 : index
    %c0_76 = arith.constant 0 : index
    %165 = vector.load %arg4[%c1, %c0_75, %c0_76] : memref<2x32x96xbf16, #tpu.memory_space<vmem>>, vector<1x32x96xbf16>
    %166 = vector.shape_cast %165 : vector<1x32x96xbf16> to vector<32x96xbf16>
    %167 = arith.truncf %164 : vector<8x32xf32> to vector<8x32xbf16>
    %cst_77 = arith.constant dense<0.000000e+00> : vector<8x96xf32>
    %168 = tpu.matmul %167, %166, %cst_77 {dimension_numbers = #tpu.dot_dimension_numbers<[1], [0], [0], [1], [0, 0, 1, 1], [], []>} : vector<8x32xbf16>, vector<32x96xbf16>, vector<8x96xf32> -> vector<8x96xf32>
    %c1_78 = arith.constant 1 : index
    %c0_79 = arith.constant 0 : index
    %c0_80 = arith.constant 0 : index
    %169 = vector.load %arg5[%c1_78, %c0_79, %c0_80] : memref<2x1x96xf32, #tpu.memory_space<vmem>>, vector<1x1x96xf32>
    %170 = vector.shape_cast %169 : vector<1x1x96xf32> to vector<1x96xf32>
    %171 = vector.broadcast %170 : vector<1x96xf32> to vector<8x96xf32>
    %172 = arith.addf %168, %171 : vector<8x96xf32>
    %173 = arith.truncf %172 : vector<8x96xf32> to vector<8x96xbf16>
    %c1_81 = arith.constant 1 : index
    %c0_82 = arith.constant 0 : index
    %c0_83 = arith.constant 0 : index
    %174 = vector.load %arg6[%c1_81, %c0_82, %c0_83] : memref<2x32x32xbf16, #tpu.memory_space<vmem>>, vector<1x32x32xbf16>
    %175 = vector.shape_cast %174 : vector<1x32x32xbf16> to vector<32x32xbf16>
    %c1_84 = arith.constant 1 : index
    %c0_85 = arith.constant 0 : index
    %c0_86 = arith.constant 0 : index
    %176 = vector.load %arg7[%c1_84, %c0_85, %c0_86] : memref<2x1x32xf32, #tpu.memory_space<vmem>>, vector<1x1x32xf32>
    %177 = vector.shape_cast %176 : vector<1x1x32xf32> to vector<1x32xf32>
    %178 = vector.extract_strided_slice %173 {offsets = [0, 0], sizes = [8, 16], strides = [1, 1]} : vector<8x96xbf16> to vector<8x16xbf16>
    %179 = vector.extract_strided_slice %173 {offsets = [0, 32], sizes = [8, 16], strides = [1, 1]} : vector<8x96xbf16> to vector<8x16xbf16>
    %180 = vector.extract_strided_slice %173 {offsets = [0, 64], sizes = [8, 16], strides = [1, 1]} : vector<8x96xbf16> to vector<8x16xbf16>
    %cst_87 = arith.constant dense<0.000000e+00> : vector<8x8xf32>
    %181 = tpu.matmul %178, %179, %cst_87 {dimension_numbers = #tpu.dot_dimension_numbers<[1], [1], [0], [0], [0, 0, 1, 0], [], []>} : vector<8x16xbf16>, vector<8x16xbf16>, vector<8x8xf32> -> vector<8x8xf32>
    %cst_88 = arith.constant 2.500000e-01 : f32
    %182 = vector.broadcast %cst_88 : f32 to vector<8x8xf32>
    %183 = arith.mulf %181, %182 : vector<8x8xf32>
    %cst_89 = arith.constant dense<0xFF800000> : vector<8xf32>
    %184 = vector.multi_reduction <maximumf>, %183, %cst_89 [1] : vector<8x8xf32> to vector<8xf32>
    %185 = vector.shape_cast %184 : vector<8xf32> to vector<8x1xf32>
    %186 = vector.broadcast %185 : vector<8x1xf32> to vector<8x8xf32>
    %187 = arith.subf %183, %186 : vector<8x8xf32>
    %188 = math.exp %187 : vector<8x8xf32>
    %cst_90 = arith.constant dense<0.000000e+00> : vector<8xf32>
    %189 = vector.multi_reduction <add>, %188, %cst_90 [1] : vector<8x8xf32> to vector<8xf32>
    %190 = vector.shape_cast %189 : vector<8xf32> to vector<8x1xf32>
    %191 = vector.broadcast %190 : vector<8x1xf32> to vector<8x8xf32>
    %192 = arith.divf %188, %191 : vector<8x8xf32>
    %193 = arith.truncf %192 : vector<8x8xf32> to vector<8x8xbf16>
    %cst_91 = arith.constant dense<0.000000e+00> : vector<8x16xf32>
    %194 = tpu.matmul %193, %180, %cst_91 {dimension_numbers = #tpu.dot_dimension_numbers<[1], [0], [0], [1], [0, 0, 1, 1], [], []>} : vector<8x8xbf16>, vector<8x16xbf16>, vector<8x16xf32> -> vector<8x16xf32>
    %195 = arith.truncf %194 : vector<8x16xf32> to vector<8x16xbf16>
    %196 = vector.extract_strided_slice %175 {offsets = [0, 0], sizes = [16, 32], strides = [1, 1]} : vector<32x32xbf16> to vector<16x32xbf16>
    %cst_92 = arith.constant dense<0.000000e+00> : vector<8x32xf32>
    %197 = tpu.matmul %195, %196, %cst_92 {dimension_numbers = #tpu.dot_dimension_numbers<[1], [0], [0], [1], [0, 0, 1, 1], [], []>} : vector<8x16xbf16>, vector<16x32xbf16>, vector<8x32xf32> -> vector<8x32xf32>
    %198 = vector.broadcast %177 : vector<1x32xf32> to vector<8x32xf32>
    %199 = arith.addf %198, %197 : vector<8x32xf32>
    %200 = vector.extract_strided_slice %173 {offsets = [0, 16], sizes = [8, 16], strides = [1, 1]} : vector<8x96xbf16> to vector<8x16xbf16>
    %201 = vector.extract_strided_slice %173 {offsets = [0, 48], sizes = [8, 16], strides = [1, 1]} : vector<8x96xbf16> to vector<8x16xbf16>
    %202 = vector.extract_strided_slice %173 {offsets = [0, 80], sizes = [8, 16], strides = [1, 1]} : vector<8x96xbf16> to vector<8x16xbf16>
    %cst_93 = arith.constant dense<0.000000e+00> : vector<8x8xf32>
    %203 = tpu.matmul %200, %201, %cst_93 {dimension_numbers = #tpu.dot_dimension_numbers<[1], [1], [0], [0], [0, 0, 1, 0], [], []>} : vector<8x16xbf16>, vector<8x16xbf16>, vector<8x8xf32> -> vector<8x8xf32>
    %cst_94 = arith.constant 2.500000e-01 : f32
    %204 = vector.broadcast %cst_94 : f32 to vector<8x8xf32>
    %205 = arith.mulf %203, %204 : vector<8x8xf32>
    %cst_95 = arith.constant dense<0xFF800000> : vector<8xf32>
    %206 = vector.multi_reduction <maximumf>, %205, %cst_95 [1] : vector<8x8xf32> to vector<8xf32>
    %207 = vector.shape_cast %206 : vector<8xf32> to vector<8x1xf32>
    %208 = vector.broadcast %207 : vector<8x1xf32> to vector<8x8xf32>
    %209 = arith.subf %205, %208 : vector<8x8xf32>
    %210 = math.exp %209 : vector<8x8xf32>
    %cst_96 = arith.constant dense<0.000000e+00> : vector<8xf32>
    %211 = vector.multi_reduction <add>, %210, %cst_96 [1] : vector<8x8xf32> to vector<8xf32>
    %212 = vector.shape_cast %211 : vector<8xf32> to vector<8x1xf32>
    %213 = vector.broadcast %212 : vector<8x1xf32> to vector<8x8xf32>
    %214 = arith.divf %210, %213 : vector<8x8xf32>
    %215 = arith.truncf %214 : vector<8x8xf32> to vector<8x8xbf16>
    %cst_97 = arith.constant dense<0.000000e+00> : vector<8x16xf32>
    %216 = tpu.matmul %215, %202, %cst_97 {dimension_numbers = #tpu.dot_dimension_numbers<[1], [0], [0], [1], [0, 0, 1, 1], [], []>} : vector<8x8xbf16>, vector<8x16xbf16>, vector<8x16xf32> -> vector<8x16xf32>
    %217 = arith.truncf %216 : vector<8x16xf32> to vector<8x16xbf16>
    %218 = vector.extract_strided_slice %175 {offsets = [16, 0], sizes = [16, 32], strides = [1, 1]} : vector<32x32xbf16> to vector<16x32xbf16>
    %cst_98 = arith.constant dense<0.000000e+00> : vector<8x32xf32>
    %219 = tpu.matmul %217, %218, %cst_98 {dimension_numbers = #tpu.dot_dimension_numbers<[1], [0], [0], [1], [0, 0, 1, 1], [], []>} : vector<8x16xbf16>, vector<16x32xbf16>, vector<8x32xf32> -> vector<8x32xf32>
    %220 = arith.addf %199, %219 : vector<8x32xf32>
    %221 = arith.addf %164, %220 : vector<8x32xf32>
    %c1_99 = arith.constant 1 : index
    %c0_100 = arith.constant 0 : index
    %c0_101 = arith.constant 0 : index
    %222 = vector.load %arg8[%c1_99, %c0_100, %c0_101] : memref<2x1x32xf32, #tpu.memory_space<vmem>>, vector<1x1x32xf32>
    %223 = vector.shape_cast %222 : vector<1x1x32xf32> to vector<1x32xf32>
    %c1_102 = arith.constant 1 : index
    %c0_103 = arith.constant 0 : index
    %c0_104 = arith.constant 0 : index
    %224 = vector.load %arg9[%c1_102, %c0_103, %c0_104] : memref<2x1x32xf32, #tpu.memory_space<vmem>>, vector<1x1x32xf32>
    %225 = vector.shape_cast %224 : vector<1x1x32xf32> to vector<1x32xf32>
    %cst_105 = arith.constant dense<0.000000e+00> : vector<8xf32>
    %226 = vector.multi_reduction <add>, %221, %cst_105 [1] : vector<8x32xf32> to vector<8xf32>
    %227 = vector.shape_cast %226 : vector<8xf32> to vector<8x1xf32>
    %cst_106 = arith.constant 3.200000e+01 : f32
    %228 = vector.broadcast %cst_106 : f32 to vector<8x1xf32>
    %229 = arith.divf %227, %228 : vector<8x1xf32>
    %230 = vector.broadcast %229 : vector<8x1xf32> to vector<8x32xf32>
    %231 = arith.subf %221, %230 : vector<8x32xf32>
    %232 = arith.mulf %231, %231 : vector<8x32xf32>
    %cst_107 = arith.constant dense<0.000000e+00> : vector<8xf32>
    %233 = vector.multi_reduction <add>, %232, %cst_107 [1] : vector<8x32xf32> to vector<8xf32>
    %234 = vector.shape_cast %233 : vector<8xf32> to vector<8x1xf32>
    %cst_108 = arith.constant 3.200000e+01 : f32
    %235 = vector.broadcast %cst_108 : f32 to vector<8x1xf32>
    %236 = arith.divf %234, %235 : vector<8x1xf32>
    %237 = vector.broadcast %229 : vector<8x1xf32> to vector<8x32xf32>
    %238 = arith.subf %221, %237 : vector<8x32xf32>
    %cst_109 = arith.constant 9.99999996E-13 : f32
    %239 = vector.broadcast %cst_109 : f32 to vector<8x1xf32>
    %240 = arith.addf %236, %239 : vector<8x1xf32>
    %241 = math.rsqrt %240 : vector<8x1xf32>
    %242 = vector.broadcast %241 : vector<8x1xf32> to vector<8x32xf32>
    %243 = arith.mulf %238, %242 : vector<8x32xf32>
    %244 = vector.broadcast %223 : vector<1x32xf32> to vector<8x32xf32>
    %245 = arith.mulf %243, %244 : vector<8x32xf32>
    %246 = vector.broadcast %225 : vector<1x32xf32> to vector<8x32xf32>
    %247 = arith.addf %245, %246 : vector<8x32xf32>
    %c1_110 = arith.constant 1 : index
    %c0_111 = arith.constant 0 : index
    %c0_112 = arith.constant 0 : index
    %248 = vector.load %arg10[%c1_110, %c0_111, %c0_112] : memref<2x32x64xbf16, #tpu.memory_space<vmem>>, vector<1x32x64xbf16>
    %249 = vector.shape_cast %248 : vector<1x32x64xbf16> to vector<32x64xbf16>
    %250 = arith.truncf %247 : vector<8x32xf32> to vector<8x32xbf16>
    %cst_113 = arith.constant dense<0.000000e+00> : vector<8x64xf32>
    %251 = tpu.matmul %250, %249, %cst_113 {dimension_numbers = #tpu.dot_dimension_numbers<[1], [0], [0], [1], [0, 0, 1, 1], [], []>} : vector<8x32xbf16>, vector<32x64xbf16>, vector<8x64xf32> -> vector<8x64xf32>
    %c1_114 = arith.constant 1 : index
    %c0_115 = arith.constant 0 : index
    %c0_116 = arith.constant 0 : index
    %252 = vector.load %arg11[%c1_114, %c0_115, %c0_116] : memref<2x1x64xf32, #tpu.memory_space<vmem>>, vector<1x1x64xf32>
    %253 = vector.shape_cast %252 : vector<1x1x64xf32> to vector<1x64xf32>
    %254 = vector.broadcast %253 : vector<1x64xf32> to vector<8x64xf32>
    %255 = arith.addf %251, %254 : vector<8x64xf32>
    %256 = arith.mulf %255, %255 : vector<8x64xf32>
    %257 = arith.mulf %255, %256 : vector<8x64xf32>
    %cst_117 = arith.constant 4.471500e-02 : f32
    %258 = vector.broadcast %cst_117 : f32 to vector<8x64xf32>
    %259 = arith.mulf %258, %257 : vector<8x64xf32>
    %260 = arith.addf %255, %259 : vector<8x64xf32>
    %cst_118 = arith.constant 0.797884583 : f32
    %261 = vector.broadcast %cst_118 : f32 to vector<8x64xf32>
    %262 = arith.mulf %261, %260 : vector<8x64xf32>
    %263 = math.tanh %262 : vector<8x64xf32>
    %cst_119 = arith.constant 1.000000e+00 : f32
    %264 = vector.broadcast %cst_119 : f32 to vector<8x64xf32>
    %265 = arith.addf %264, %263 : vector<8x64xf32>
    %cst_120 = arith.constant 5.000000e-01 : f32
    %266 = vector.broadcast %cst_120 : f32 to vector<8x64xf32>
    %267 = arith.mulf %266, %265 : vector<8x64xf32>
    %268 = arith.mulf %255, %267 : vector<8x64xf32>
    %c1_121 = arith.constant 1 : index
    %c0_122 = arith.constant 0 : index
    %c0_123 = arith.constant 0 : index
    %269 = vector.load %arg12[%c1_121, %c0_122, %c0_123] : memref<2x64x32xbf16, #tpu.memory_space<vmem>>, vector<1x64x32xbf16>
    %270 = vector.shape_cast %269 : vector<1x64x32xbf16> to vector<64x32xbf16>
    %271 = arith.truncf %268 : vector<8x64xf32> to vector<8x64xbf16>
    %cst_124 = arith.constant dense<0.000000e+00> : vector<8x32xf32>
    %272 = tpu.matmul %271, %270, %cst_124 {dimension_numbers = #tpu.dot_dimension_numbers<[1], [0], [0], [1], [0, 0, 1, 1], [], []>} : vector<8x64xbf16>, vector<64x32xbf16>, vector<8x32xf32> -> vector<8x32xf32>
    %c1_125 = arith.constant 1 : index
    %c0_126 = arith.constant 0 : index
    %c0_127 = arith.constant 0 : index
    %273 = vector.load %arg13[%c1_125, %c0_126, %c0_127] : memref<2x1x32xf32, #tpu.memory_space<vmem>>, vector<1x1x32xf32>
    %274 = vector.shape_cast %273 : vector<1x1x32xf32> to vector<1x32xf32>
    %275 = vector.broadcast %274 : vector<1x32xf32> to vector<8x32xf32>
    %276 = arith.addf %272, %275 : vector<8x32xf32>
    %277 = arith.addf %247, %276 : vector<8x32xf32>
    %c1_128 = arith.constant 1 : index
    %c0_129 = arith.constant 0 : index
    %c0_130 = arith.constant 0 : index
    %278 = vector.load %arg14[%c1_128, %c0_129, %c0_130] : memref<2x1x32xf32, #tpu.memory_space<vmem>>, vector<1x1x32xf32>
    %279 = vector.shape_cast %278 : vector<1x1x32xf32> to vector<1x32xf32>
    %c1_131 = arith.constant 1 : index
    %c0_132 = arith.constant 0 : index
    %c0_133 = arith.constant 0 : index
    %280 = vector.load %arg15[%c1_131, %c0_132, %c0_133] : memref<2x1x32xf32, #tpu.memory_space<vmem>>, vector<1x1x32xf32>
    %281 = vector.shape_cast %280 : vector<1x1x32xf32> to vector<1x32xf32>
    %cst_134 = arith.constant dense<0.000000e+00> : vector<8xf32>
    %282 = vector.multi_reduction <add>, %277, %cst_134 [1] : vector<8x32xf32> to vector<8xf32>
    %283 = vector.shape_cast %282 : vector<8xf32> to vector<8x1xf32>
    %cst_135 = arith.constant 3.200000e+01 : f32
    %284 = vector.broadcast %cst_135 : f32 to vector<8x1xf32>
    %285 = arith.divf %283, %284 : vector<8x1xf32>
    %286 = vector.broadcast %285 : vector<8x1xf32> to vector<8x32xf32>
    %287 = arith.subf %277, %286 : vector<8x32xf32>
    %288 = arith.mulf %287, %287 : vector<8x32xf32>
    %cst_136 = arith.constant dense<0.000000e+00> : vector<8xf32>
    %289 = vector.multi_reduction <add>, %288, %cst_136 [1] : vector<8x32xf32> to vector<8xf32>
    %290 = vector.shape_cast %289 : vector<8xf32> to vector<8x1xf32>
    %cst_137 = arith.constant 3.200000e+01 : f32
    %291 = vector.broadcast %cst_137 : f32 to vector<8x1xf32>
    %292 = arith.divf %290, %291 : vector<8x1xf32>
    %293 = vector.broadcast %285 : vector<8x1xf32> to vector<8x32xf32>
    %294 = arith.subf %277, %293 : vector<8x32xf32>
    %cst_138 = arith.constant 9.99999996E-13 : f32
    %295 = vector.broadcast %cst_138 : f32 to vector<8x1xf32>
    %296 = arith.addf %292, %295 : vector<8x1xf32>
    %297 = math.rsqrt %296 : vector<8x1xf32>
    %298 = vector.broadcast %297 : vector<8x1xf32> to vector<8x32xf32>
    %299 = arith.mulf %294, %298 : vector<8x32xf32>
    %300 = vector.broadcast %279 : vector<1x32xf32> to vector<8x32xf32>
    %301 = arith.mulf %299, %300 : vector<8x32xf32>
    %302 = vector.broadcast %281 : vector<1x32xf32> to vector<8x32xf32>
    %303 = arith.addf %301, %302 : vector<8x32xf32>
    %c0_139 = arith.constant 0 : index
    %c0_140 = arith.constant 0 : index
    %304 = vector.load %arg16[%c0_139, %c0_140] : memref<32x128xbf16, #tpu.memory_space<vmem>>, vector<32x128xbf16>
    %305 = arith.truncf %303 : vector<8x32xf32> to vector<8x32xbf16>
    %cst_141 = arith.constant dense<0.000000e+00> : vector<8x128xf32>
    %306 = tpu.matmul %305, %304, %cst_141 {dimension_numbers = #tpu.dot_dimension_numbers<[1], [0], [0], [1], [0, 0, 1, 1], [], []>} : vector<8x32xbf16>, vector<32x128xbf16>, vector<8x128xf32> -> vector<8x128xf32>
    %c0_142 = arith.constant 0 : index
    %c0_143 = arith.constant 0 : index
    %307 = vector.load %arg17[%c0_142, %c0_143] : memref<1x128xf32, #tpu.memory_space<vmem>>, vector<1x128xf32>
    %308 = vector.broadcast %307 : vector<1x128xf32> to vector<8x128xf32>
    %309 = arith.addf %306, %308 : vector<8x128xf32>
    %c0_144 = arith.constant 0 : index
    %c0_145 = arith.constant 0 : index
    %c0_146 = arith.constant 0 : index
    %310 = vector.load %arg19[%c0_144, %c0_145, %c0_146] : memref<1x8x128xf32, #tpu.memory_space<vmem>>, vector<1x8x128xf32>
    %311 = vector.shape_cast %310 : vector<1x8x128xf32> to vector<8x128xf32>
    %312 = vector.shape_cast %309 : vector<8x128xf32> to vector<1x8x128xf32>
    tpu.vector_store %arg19[%c0_144, %c0_145, %c0_146], %312 {strides = array<i32>} : memref<1x8x128xf32, #tpu.memory_space<vmem>>, vector<1x8x128xf32>,
    %313 = tpu.iota {dimensions = array<i32: 1>} : vector<8x128xi32>
    %c5_i32 = arith.constant 5 : i32
    %314 = vector.broadcast %c5_i32 : i32 to vector<8x128xi32>
    %315 = arith.cmpi slt, %313, %314 : vector<8x128xi32>
    %cst_147 = arith.constant -1.000000e+30 : f32
    %316 = vector.broadcast %cst_147 : f32 to vector<8x128xf32>
    %317 = arith.select %315, %309, %316 : vector<8x128xi1>, vector<8x128xf32>
    %cst_148 = arith.constant dense<0xFF800000> : vector<8xf32>
    %318 = vector.multi_reduction <maximumf>, %317, %cst_148 [1] : vector<8x128xf32> to vector<8xf32>
    %319 = vector.shape_cast %318 : vector<8xf32> to vector<8x1xf32>
    %320 = vector.broadcast %319 : vector<8x1xf32> to vector<8x128xf32>
    %321 = arith.subf %317, %320 : vector<8x128xf32>
    %322 = math.exp %321 : vector<8x128xf32>
    %cst_149 = arith.constant dense<0.000000e+00> : vector<8xf32>
    %323 = vector.multi_reduction <add>, %322, %cst_149 [1] : vector<8x128xf32> to vector<8xf32>
    %324 = vector.shape_cast %323 : vector<8xf32> to vector<8x1xf32>
    %325 = math.log %324 : vector<8x1xf32>
    %326 = arith.addf %325, %319 : vector<8x1xf32>
    %c0_150 = arith.constant 0 : index
    %c0_151 = arith.constant 0 : index
    %c0_152 = arith.constant 0 : index
    %327 = vector.load %arg18[%c0_150, %c0_151, %c0_152] : memref<1x8x1xi32, #tpu.memory_space<vmem>>, vector<1x8x1xi32>
    %328 = vector.shape_cast %327 : vector<1x8x1xi32> to vector<8x1xi32>
    %329 = vector.broadcast %328 : vector<8x1xi32> to vector<8x128xi32>
    %330 = arith.cmpi eq, %313, %329 : vector<8x128xi32>
    %331 = arith.extui %330 : vector<8x128xi1> to vector<8x128xi32>
    %332 = arith.sitofp %331 : vector<8x128xi32> to vector<8x128xf32>
    %333 = vector.broadcast %326 : vector<8x1xf32> to vector<8x128xf32>
    %334 = arith.subf %317, %333 : vector<8x128xf32>
    %335 = arith.mulf %332, %334 : vector<8x128xf32>
    %cst_153 = arith.constant dense<0.000000e+00> : vector<8xf32>
    %336 = vector.multi_reduction <add>, %335, %cst_153 [1] : vector<8x128xf32> to vector<8xf32>
    %337 = vector.shape_cast %336 : vector<8xf32> to vector<8x1xf32>
    %cst_154 = arith.constant 0.000000e+00 : f32
    %338 = vector.broadcast %cst_154 : f32 to vector<8x1xf32>
    %339 = arith.subf %338, %337 : vector<8x1xf32>
    %cst_155 = arith.constant dense<0.000000e+00> : vector<1xf32>
    %340 = vector.multi_reduction <add>, %339, %cst_155 [0] : vector<8x1xf32> to vector<1xf32>
    %341 = vector.shape_cast %340 : vector<1xf32> to vector<1x1xf32>
    %c0_156 = arith.constant 0 : index
    %c0_157 = arith.constant 0 : index
    %c0_158 = arith.constant 0 : index
    %342 = vector.load %arg20[%c0_156, %c0_157, %c0_158] : memref<1x1x1xf32, #tpu.memory_space<vmem>>, vector<1x1x1xf32>
    %343 = vector.shape_cast %342 : vector<1x1x1xf32> to vector<1x1xf32>
    %344 = vector.shape_cast %341 : vector<1x1xf32> to vector<1x1x1xf32>
    tpu.vector_store %arg20[%c0_156, %c0_157, %c0_158], %344 {strides = array<i32>} : memref<1x1x1xf32, #tpu.memory_space<vmem>>, vector<1x1x1xf32>,
    return
  }
  func.func @transform_0(%arg0: i32) -> (i32, i32, i32) {
    %c0_i32 = arith.constant 0 : i32
    %c0_i32_0 = arith.constant 0 : i32
    %c0_i32_1 = arith.constant 0 : i32
    return %arg0, %c0_i32, %c0_i32_0 : i32, i32, i32
  }
  func.func @transform_1(%arg0: i32) -> (i32, i32) {
    %c0_i32 = arith.constant 0 : i32
    %c0_i32_0 = arith.constant 0 : i32
    %c0_i32_1 = arith.constant 0 : i32
    return %c0_i32, %c0_i32_0 : i32, i32
  }
  func.func @transform_2(%arg0: i32) -> (i32, i32) {
    %c0_i32 = arith.constant 0 : i32
    %c0_i32_0 = arith.constant 0 : i32
    %c0_i32_1 = arith.constant 0 : i32
    return %c0_i32, %c0_i32_0 : i32, i32
  }
  func.func @transform_3(%arg0: i32) -> (i32, i32, i32) {
    %c0_i32 = arith.constant 0 : i32
    %c0_i32_0 = arith.constant 0 : i32
    %c0_i32_1 = arith.constant 0 : i32
    %c0_i32_2 = arith.constant 0 : i32
    return %c0_i32, %c0_i32_0, %c0_i32_1 : i32, i32, i32
  }
  func.func @transform_4(%arg0: i32) -> (i32, i32, i32) {
    %c0_i32 = arith.constant 0 : i32
    %c0_i32_0 = arith.constant 0 : i32
    %c0_i32_1 = arith.constant 0 : i32
    %c0_i32_2 = arith.constant 0 : i32
    return %c0_i32, %c0_i32_0, %c0_i32_1 : i32, i32, i32
  }
  func.func @transform_5(%arg0: i32) -> (i32, i32, i32) {
    %c0_i32 = arith.constant 0 : i32
    %c0_i32_0 = arith.constant 0 : i32
    %c0_i32_1 = arith.constant 0 : i32
    %c0_i32_2 = arith.constant 0 : i32
    return %c0_i32, %c0_i32_0, %c0_i32_1 : i32, i32, i32
  }
  func.func @transform_6(%arg0: i32) -> (i32, i32, i32) {
    %c0_i32 = arith.constant 0 : i32
    %c0_i32_0 = arith.constant 0 : i32
    %c0_i32_1 = arith.constant 0 : i32
    %c0_i32_2 = arith.constant 0 : i32
    return %c0_i32, %c0_i32_0, %c0_i32_1 : i32, i32, i32
  }
  func.func @transform_7(%arg0: i32) -> (i32, i32, i32) {
    %c0_i32 = arith.constant 0 : i32
    %c0_i32_0 = arith.constant 0 : i32
    %c0_i32_1 = arith.constant 0 : i32
    %c0_i32_2 = arith.constant 0 : i32
    return %c0_i32, %c0_i32_0, %c0_i32_1 : i32, i32, i32
  }
  func.func @transform_8(%arg0: i32) -> (i32, i32, i32) {
    %c0_i32 = arith.constant 0 : i32
    %c0_i32_0 = arith.constant 0 : i32
    %c0_i32_1 = arith.constant 0 : i32
    %c0_i32_2 = arith.constant 0 : i32
    return %c0_i32, %c0_i32_0, %c0_i32_1 : i32, i32, i32
  }
  func.func @transform_9(%arg0: i32) -> (i32, i32, i32) {
    %c0_i32 = arith.constant 0 : i32
    %c0_i32_0 = arith.constant 0 : i32
    %c0_i32_1 = arith.constant 0 : i32
    %c0_i32_2 = arith.constant 0 : i32
    return %c0_i32, %c0_i32_0, %c0_i32_1 : i32, i32, i32
  }
  func.func @transform_10(%arg0: i32) -> (i32, i32, i32) {
    %c0_i32 = arith.constant 0 : i32
    %c0_i32_0 = arith.constant 0 : i32
    %c0_i32_1 = arith.constant 0 : i32
    %c0_i32_2 = arith.constant 0 : i32
    return %c0_i32, %c0_i32_0, %c0_i32_1 : i32, i32, i32
  }
  func.func @transform_11(%arg0: i32) -> (i32, i32, i32) {
    %c0_i32 = arith.constant 0 : i32
    %c0_i32_0 = arith.constant 0 : i32
    %c0_i32_1 = arith.constant 0 : i32
    %c0_i32_2 = arith.constant 0 : i32
    return %c0_i32, %c0_i32_0, %c0_i32_1 : i32, i32, i32
  }
  func.func @transform_12(%arg0: i32) -> (i32, i32, i32) {
    %c0_i32 = arith.constant 0 : i32
    %c0_i32_0 = arith.constant 0 : i32
    %c0_i32_1 = arith.constant 0 : i32
    %c0_i32_2 = arith.constant 0 : i32
    return %c0_i32, %c0_i32_0, %c0_i32_1 : i32, i32, i32
  }
  func.func @transform_13(%arg0: i32) -> (i32, i32, i32) {
    %c0_i32 = arith.constant 0 : i32
    %c0_i32_0 = arith.constant 0 : i32
    %c0_i32_1 = arith.constant 0 : i32
    %c0_i32_2 = arith.constant 0 : i32
    return %c0_i32, %c0_i32_0, %c0_i32_1 : i32, i32, i32
  }
  func.func @transform_14(%arg0: i32) -> (i32, i32, i32) {
    %c0_i32 = arith.constant 0 : i32
    %c0_i32_0 = arith.constant 0 : i32
    %c0_i32_1 = arith.constant 0 : i32
    %c0_i32_2 = arith.constant 0 : i32
    return %c0_i32, %c0_i32_0, %c0_i32_1 : i32, i32, i32
  }
  func.func @transform_15(%arg0: i32) -> (i32, i32) {
    %c0_i32 = arith.constant 0 : i32
    %c0_i32_0 = arith.constant 0 : i32
    %c0_i32_1 = arith.constant 0 : i32
    return %c0_i32, %c0_i32_0 : i32, i32
  }
  func.func @transform_16(%arg0: i32) -> (i32, i32) {
    %c0_i32 = arith.constant 0 : i32
    %c0_i32_0 = arith.constant 0 : i32
    %c0_i32_1 = arith.constant 0 : i32
    return %c0_i32, %c0_i32_0 : i32, i32
  }
  func.func @transform_17(%arg0: i32) -> (i32, i32, i32) {
    %c0_i32 = arith.constant 0 : i32
    %c0_i32_0 = arith.constant 0 : i32
    %c0_i32_1 = arith.constant 0 : i32
    return %arg0, %c0_i32, %c0_i32_0 : i32, i32, i32
  }
  func.func @transform_18(%arg0: i32) -> (i32, i32, i32) {
    %c0_i32 = arith.constant 0 : i32
    %c0_i32_0 = arith.constant 0 : i32
    %c0_i32_1 = arith.constant 0 : i32
    return %arg0, %c0_i32, %c0_i32_0 : i32, i32, i32
  }
  func.func @transform_19(%arg0: i32) -> (i32, i32, i32) {
    %c0_i32 = arith.constant 0 : i32
    %c0_i32_0 = arith.constant 0 : i32
    %c0_i32_1 = arith.constant 0 : i32
    return %arg0, %c0_i32, %c0_i32_0 : i32, i32, i32
  }
}

</mosaic_0001>

<llo_original>
// kernel: bert_forward.1
$region0: #{bert_forward.1}
  #allocation0 [shape = 'u32[]', space=smem, size = 0x4, offset = 0x4, fixed_abs, tag = 'smem constant byte address 0x4 - core index']
  #allocation1 [shape = 'u32[144,128]{1,0:T(1,128)}', space=vmem, size = 0x12000, scoped, tag = 'internal scratch']
  %s0 = inlined_call_operand.vmem [shape: f32[2,8,32], index: 0, kind: input, shape index: {}]
  %s1 = inlined_call_operand.vmem [shape: f32[1,32], index: 1, kind: input, shape index: {}]
  %s2 = inlined_call_operand.vmem [shape: f32[1,32], index: 2, kind: input, shape index: {}]
  %s3 = inlined_call_operand.vmem [shape: bf16[2,32,96], index: 3, kind: input, shape index: {}]
  %s4 = inlined_call_operand.vmem [shape: f32[2,1,96], index: 4, kind: input, shape index: {}]
  %s5 = inlined_call_operand.vmem [shape: bf16[2,32,32], index: 5, kind: input, shape index: {}]
  %s6 = inlined_call_operand.vmem [shape: f32[2,1,32], index: 6, kind: input, shape index: {}]
  %s7 = inlined_call_operand.vmem [shape: f32[2,1,32], index: 7, kind: input, shape index: {}]
  %s8 = inlined_call_operand.vmem [shape: f32[2,1,32], index: 8, kind: input, shape index: {}]
  %s9 = inlined_call_operand.vmem [shape: bf16[2,32,64], index: 9, kind: input, shape index: {}]
  %s10 = inlined_call_operand.vmem [shape: f32[2,1,64], index: 10, kind: input, shape index: {}]
  %s11 = inlined_call_operand.vmem [shape: bf16[2,64,32], index: 11, kind: input, shape index: {}]
  %s12 = inlined_call_operand.vmem [shape: f32[2,1,32], index: 12, kind: input, shape index: {}]
  %s13 = inlined_call_operand.vmem [shape: f32[2,1,32], index: 13, kind: input, shape index: {}]
  %s14 = inlined_call_operand.vmem [shape: f32[2,1,32], index: 14, kind: input, shape index: {}]
  %s15 = inlined_call_operand.vmem [shape: bf16[32,128], index: 15, kind: input, shape index: {}]
  %s16 = inlined_call_operand.vmem [shape: f32[1,128], index: 16, kind: input, shape index: {}]
  %s17 = inlined_call_operand.vmem [shape: s32[2,8,1], index: 17, kind: input, shape index: {}]
  %s18 = inlined_call_operand.vmem [shape: f32[2,8,128], index: 18, kind: output, shape index: {0}]
  %s19 = inlined_call_operand.vmem [shape: f32[2,1,1], index: 19, kind: output, shape index: {1}]
  %20 = xla_tuple %s18, %s19
  %s21 = sld [smem:[#allocation0]]
  $region113: #{bert_forward.1} parent=0
    _
  %s23 = ssub.s32 1, %s21
  %s24 = scalar_select 0, %s23, %s21
  loop: start=0, step=1, limit=4
  $region2: #{bert_forward.1} parent=0 // loop_pre_header
    _
  $region3: #{bert_forward.1} parent=0 // loop_header
    %s26 = sphi 0, %s30
    %p27 = scmp.ge.s32.totalorder %s26, 4
    %s36 = sphi 0, %s38
    %s39 = sphi 0, %s36
    %s40 = sphi 0, %s39
    %s56 = sphi 0, %s40
    %s60 = sphi 0, %s60
    %s62 = sphi 0, %s60
    %s63 = sphi 0, %s62
    %s77 = sphi 0, %s63
    %s81 = sphi 0, %s81
    %s83 = sphi 0, %s81
    %s84 = sphi 0, %s83
    %s98 = sphi 0, %s84
    %s102 = sphi 0, %s102
    %s104 = sphi 0, %s102
    %s105 = sphi 0, %s104
    %s119 = sphi 0, %s105
    %s123 = sphi 0, %s123
    %s125 = sphi 0, %s123
    %s126 = sphi 0, %s125
    %s140 = sphi 0, %s126
    %s144 = sphi 0, %s144
    %s146 = sphi 0, %s144
    %s147 = sphi 0, %s146
    %s161 = sphi 0, %s147
    %s165 = sphi 0, %s165
    %s167 = sphi 0, %s165
    %s168 = sphi 0, %s167
    %s182 = sphi 0, %s168
    %s186 = sphi 0, %s186
    %s188 = sphi 0, %s186
    %s189 = sphi 0, %s188
    %s203 = sphi 0, %s189
    %s207 = sphi 0, %s207
    %s209 = sphi 0, %s207
    %s210 = sphi 0, %s209
    %s224 = sphi 0, %s210
    %s228 = sphi 0, %s228
    %s230 = sphi 0, %s228
    %s231 = sphi 0, %s230
    %s245 = sphi 0, %s231
    %s249 = sphi 0, %s249
    %s251 = sphi 0, %s249
    %s252 = sphi 0, %s251
    %s266 = sphi 0, %s252
    %s270 = sphi 0, %s270
    %s272 = sphi 0, %s270
    %s273 = sphi 0, %s272
    %s287 = sphi 0, %s273
    %s291 = sphi 0, %s291
    %s293 = sphi 0, %s291
    %s294 = sphi 0, %s293
    %s308 = sphi 0, %s294
    %s312 = sphi 0, %s312
    %s314 = sphi 0, %s312
    %s315 = sphi 0, %s314
    %s329 = sphi 0, %s315
    %s333 = sphi 0, %s333
    %s335 = sphi 0, %s333
    %s336 = sphi 0, %s335
    %s350 = sphi 0, %s336
    %s354 = sphi 0, %s354
    %s356 = sphi 0, %s354
    %s357 = sphi 0, %s356
    %s371 = sphi 0, %s357
    %s375 = sphi 0, %s375
    %s377 = sphi 0, %s375
    %s378 = sphi 0, %s377
    %s392 = sphi 0, %s378
    %s398 = sphi 0, %s400
    %s401 = sphi 0, %s398
    %s402 = sphi 0, %s401
    %s418 = sphi 0, %s402
    %s424 = sphi 0, %s426
    %s427 = sphi 0, %s424
    %s428 = sphi 0, %s427
    %s444 = sphi 0, %s428
    %s450 = sphi 0, %s452
    %s453 = sphi 0, %s450
    %s454 = sphi 0, %s453
    %s470 = sphi 0, %s454
  $region4: #{bert_forward.1} parent=0 // loop_header_branch
    %29 = sbr.rel (%p27) target = $region8
  $region5: #{bert_forward.1} parent=0 // loop_body
    %s31 = ssub.s32 %s26, 1
    %s32 = ssub.s32 %s26, 2
    %s33 = sadd.s32 %s26, 1
    %s34 = ssub.s32 %s26, %s33
    %p35 = scmp.eq.s32.totalorder %s34, 0
    %s37 = sadd.s32 %s36, 1
    %s38 = scalar_select %p35, %s36, %s37
    %p41 = pneg %p35
    %p42 = scmp.eq.s32.totalorder %s26, 1
    %p43 = por %p41, %p42
    %p44 = scmp.ne.s32.totalorder %s36, %s39
    %p45 = scmp.eq.s32.totalorder %s26, 0
    %p46 = por %p44, %p45
    %p47 = scmp.ne.s32.totalorder %s36, %s39
    %p48 = scmp.eq.s32.totalorder %s31, 1
    %p49 = por %p47, %p48
    %p50 = scmp.ne.s32.totalorder %s39, %s40
    %p51 = scmp.eq.s32.totalorder %s31, 0
    %p52 = por %p50, %p51
    %p53 = scmp.ne.s32.totalorder %s39, %s40
    %p54 = scmp.eq.s32.totalorder %s32, 1
    %p55 = por %p53, %p54
    %p57 = scmp.ne.s32.totalorder %s40, %s56
    %p58 = scmp.eq.s32.totalorder %s32, 0
    %p59 = por %p57, %p58
    %s61 = sadd.s32 %s60, 1
    %p64 = scmp.eq.s32.totalorder %s26, 1
    %p65 = scmp.ne.s32.totalorder %s60, %s62
    %p66 = scmp.eq.s32.totalorder %s26, 0
    %p67 = por %p65, %p66
    %p68 = scmp.ne.s32.totalorder %s60, %s62
    %p69 = scmp.eq.s32.totalorder %s31, 1
    %p70 = por %p68, %p69
    %p71 = scmp.ne.s32.totalorder %s62, %s63
    %p72 = scmp.eq.s32.totalorder %s31, 0
    %p73 = por %p71, %p72
    %p74 = scmp.ne.s32.totalorder %s62, %s63
    %p75 = scmp.eq.s32.totalorder %s32, 1
    %p76 = por %p74, %p75
    %p78 = scmp.ne.s32.totalorder %s63, %s77
    %p79 = scmp.eq.s32.totalorder %s32, 0
    %p80 = por %p78, %p79
    %s82 = sadd.s32 %s81, 1
    %p85 = scmp.eq.s32.totalorder %s26, 1
    %p86 = scmp.ne.s32.totalorder %s81, %s83
    %p87 = scmp.eq.s32.totalorder %s26, 0
    %p88 = por %p86, %p87
    %p89 = scmp.ne.s32.totalorder %s81, %s83
    %p90 = scmp.eq.s32.totalorder %s31, 1
    %p91 = por %p89, %p90
    %p92 = scmp.ne.s32.totalorder %s83, %s84
    %p93 = scmp.eq.s32.totalorder %s31, 0
    %p94 = por %p92, %p93
    %p95 = scmp.ne.s32.totalorder %s83, %s84
    %p96 = scmp.eq.s32.totalorder %s32, 1
    %p97 = por %p95, %p96
    %p99 = scmp.ne.s32.totalorder %s84, %s98
    %p100 = scmp.eq.s32.totalorder %s32, 0
    %p101 = por %p99, %p100
    %s103 = sadd.s32 %s102, 1
    %p106 = scmp.eq.s32.totalorder %s26, 1
    %p107 = scmp.ne.s32.totalorder %s102, %s104
    %p108 = scmp.eq.s32.totalorder %s26, 0
    %p109 = por %p107, %p108
    %p110 = scmp.ne.s32.totalorder %s102, %s104
    %p111 = scmp.eq.s32.totalorder %s31, 1
    %p112 = por %p110, %p111
    %p113 = scmp.ne.s32.totalorder %s104, %s105
    %p114 = scmp.eq.s32.totalorder %s31, 0
    %p115 = por %p113, %p114
    %p116 = scmp.ne.s32.totalorder %s104, %s105
    %p117 = scmp.eq.s32.totalorder %s32, 1
    %p118 = por %p116, %p117
    %p120 = scmp.ne.s32.totalorder %s105, %s119
    %p121 = scmp.eq.s32.totalorder %s32, 0
    %p122 = por %p120, %p121
    %s124 = sadd.s32 %s123, 1
    %p127 = scmp.eq.s32.totalorder %s26, 1
    %p128 = scmp.ne.s32.totalorder %s123, %s125
    %p129 = scmp.eq.s32.totalorder %s26, 0
    %p130 = por %p128, %p129
    %p131 = scmp.ne.s32.totalorder %s123, %s125
    %p132 = scmp.eq.s32.totalorder %s31, 1
    %p133 = por %p131, %p132
    %p134 = scmp.ne.s32.totalorder %s125, %s126
    %p135 = scmp.eq.s32.totalorder %s31, 0
    %p136 = por %p134, %p135
    %p137 = scmp.ne.s32.totalorder %s125, %s126
    %p138 = scmp.eq.s32.totalorder %s32, 1
    %p139 = por %p137, %p138
    %p141 = scmp.ne.s32.totalorder %s126, %s140
    %p142 = scmp.eq.s32.totalorder %s32, 0
    %p143 = por %p141, %p142
    %s145 = sadd.s32 %s144, 1
    %p148 = scmp.eq.s32.totalorder %s26, 1
    %p149 = scmp.ne.s32.totalorder %s144, %s146
    %p150 = scmp.eq.s32.totalorder %s26, 0
    %p151 = por %p149, %p150
    %p152 = scmp.ne.s32.totalorder %s144, %s146
    %p153 = scmp.eq.s32.totalorder %s31, 1
    %p154 = por %p152, %p153
    %p155 = scmp.ne.s32.totalorder %s146, %s147
    %p156 = scmp.eq.s32.totalorder %s31, 0
    %p157 = por %p155, %p156
    %p158 = scmp.ne.s32.totalorder %s146, %s147
    %p159 = scmp.eq.s32.totalorder %s32, 1
    %p160 = por %p158, %p159
    %p162 = scmp.ne.s32.totalorder %s147, %s161
    %p163 = scmp.eq.s32.totalorder %s32, 0
    %p164 = por %p162, %p163
    %s166 = sadd.s32 %s165, 1
    %p169 = scmp.eq.s32.totalorder %s26, 1
    %p170 = scmp.ne.s32.totalorder %s165, %s167
    %p171 = scmp.eq.s32.totalorder %s26, 0
    %p172 = por %p170, %p171
    %p173 = scmp.ne.s32.totalorder %s165, %s167
    %p174 = scmp.eq.s32.totalorder %s31, 1
    %p175 = por %p173, %p174
    %p176 = scmp.ne.s32.totalorder %s167, %s168
    %p177 = scmp.eq.s32.totalorder %s31, 0
    %p178 = por %p176, %p177
    %p179 = scmp.ne.s32.totalorder %s167, %s168
    %p180 = scmp.eq.s32.totalorder %s32, 1
    %p181 = por %p179, %p180
    %p183 = scmp.ne.s32.totalorder %s168, %s182
    %p184 = scmp.eq.s32.totalorder %s32, 0
    %p185 = por %p183, %p184
    %s187 = sadd.s32 %s186, 1
    %p190 = scmp.eq.s32.totalorder %s26, 1
    %p191 = scmp.ne.s32.totalorder %s186, %s188
    %p192 = scmp.eq.s32.totalorder %s26, 0
    %p193 = por %p191, %p192
    %p194 = scmp.ne.s32.totalorder %s186, %s188
    %p195 = scmp.eq.s32.totalorder %s31, 1
    %p196 = por %p194, %p195
    %p197 = scmp.ne.s32.totalorder %s188, %s189
    %p198 = scmp.eq.s32.totalorder %s31, 0
    %p199 = por %p197, %p198
    %p200 = scmp.ne.s32.totalorder %s188, %s189
    %p201 = scmp.eq.s32.totalorder %s32, 1
    %p202 = por %p200, %p201
    %p204 = scmp.ne.s32.totalorder %s189, %s203
    %p205 = scmp.eq.s32.totalorder %s32, 0
    %p206 = por %p204, %p205
    %s208 = sadd.s32 %s207, 1
    %p211 = scmp.eq.s32.totalorder %s26, 1
    %p212 = scmp.ne.s32.totalorder %s207, %s209
    %p213 = scmp.eq.s32.totalorder %s26, 0
    %p214 = por %p212, %p213
    %p215 = scmp.ne.s32.totalorder %s207, %s209
    %p216 = scmp.eq.s32.totalorder %s31, 1
    %p217 = por %p215, %p216
    %p218 = scmp.ne.s32.totalorder %s209, %s210
    %p219 = scmp.eq.s32.totalorder %s31, 0
    %p220 = por %p218, %p219
    %p221 = scmp.ne.s32.totalorder %s209, %s210
    %p222 = scmp.eq.s32.totalorder %s32, 1
    %p223 = por %p221, %p222
    %p225 = scmp.ne.s32.totalorder %s210, %s224
    %p226 = scmp.eq.s32.totalorder %s32, 0
    %p227 = por %p225, %p226
    %s229 = sadd.s32 %s228, 1
    %p232 = scmp.eq.s32.totalorder %s26, 1
    %p233 = scmp.ne.s32.totalorder %s228, %s230
    %p234 = scmp.eq.s32.totalorder %s26, 0
    %p235 = por %p233, %p234
    %p236 = scmp.ne.s32.totalorder %s228, %s230
    %p237 = scmp.eq.s32.totalorder %s31, 1
    %p238 = por %p236, %p237
    %p239 = scmp.ne.s32.totalorder %s230, %s231
    %p240 = scmp.eq.s32.totalorder %s31, 0
    %p241 = por %p239, %p240
    %p242 = scmp.ne.s32.totalorder %s230, %s231
    %p243 = scmp.eq.s32.totalorder %s32, 1
    %p244 = por %p242, %p243
    %p246 = scmp.ne.s32.totalorder %s231, %s245
    %p247 = scmp.eq.s32.totalorder %s32, 0
    %p248 = por %p246, %p247
    %s250 = sadd.s32 %s249, 1
    %p253 = scmp.eq.s32.totalorder %s26, 1
    %p254 = scmp.ne.s32.totalorder %s249, %s251
    %p255 = scmp.eq.s32.totalorder %s26, 0
    %p256 = por %p254, %p255
    %p257 = scmp.ne.s32.totalorder %s249, %s251
    %p258 = scmp.eq.s32.totalorder %s31, 1
    %p259 = por %p257, %p258
    %p260 = scmp.ne.s32.totalorder %s251, %s252
    %p261 = scmp.eq.s32.totalorder %s31, 0
    %p262 = por %p260, %p261
    %p263 = scmp.ne.s32.totalorder %s251, %s252
    %p264 = scmp.eq.s32.totalorder %s32, 1
    %p265 = por %p263, %p264
    %p267 = scmp.ne.s32.totalorder %s252, %s266
    %p268 = scmp.eq.s32.totalorder %s32, 0
    %p269 = por %p267, %p268
    %s271 = sadd.s32 %s270, 1
    %p274 = scmp.eq.s32.totalorder %s26, 1
    %p275 = scmp.ne.s32.totalorder %s270, %s272
    %p276 = scmp.eq.s32.totalorder %s26, 0
    %p277 = por %p275, %p276
    %p278 = scmp.ne.s32.totalorder %s270, %s272
    %p279 = scmp.eq.s32.totalorder %s31, 1
    %p280 = por %p278, %p279
    %p281 = scmp.ne.s32.totalorder %s272, %s273
    %p282 = scmp.eq.s32.totalorder %s31, 0
    %p283 = por %p281, %p282
    %p284 = scmp.ne.s32.totalorder %s272, %s273
    %p285 = scmp.eq.s32.totalorder %s32, 1
    %p286 = por %p284, %p285
    %p288 = scmp.ne.s32.totalorder %s273, %s287
    %p289 = scmp.eq.s32.totalorder %s32, 0
    %p290 = por %p288, %p289
    %s292 = sadd.s32 %s291, 1
    %p295 = scmp.eq.s32.totalorder %s26, 1
    %p296 = scmp.ne.s32.totalorder %s291, %s293
    %p297 = scmp.eq.s32.totalorder %s26, 0
    %p298 = por %p296, %p297
    %p299 = scmp.ne.s32.totalorder %s291, %s293
    %p300 = scmp.eq.s32.totalorder %s31, 1
    %p301 = por %p299, %p300
    %p302 = scmp.ne.s32.totalorder %s293, %s294
    %p303 = scmp.eq.s32.totalorder %s31, 0
    %p304 = por %p302, %p303
    %p305 = scmp.ne.s32.totalorder %s293, %s294
    %p306 = scmp.eq.s32.totalorder %s32, 1
    %p307 = por %p305, %p306
    %p309 = scmp.ne.s32.totalorder %s294, %s308
    %p310 = scmp.eq.s32.totalorder %s32, 0
    %p311 = por %p309, %p310
    %s313 = sadd.s32 %s312, 1
    %p316 = scmp.eq.s32.totalorder %s26, 1
    %p317 = scmp.ne.s32.totalorder %s312, %s314
    %p318 = scmp.eq.s32.totalorder %s26, 0
    %p319 = por %p317, %p318
    %p320 = scmp.ne.s32.totalorder %s312, %s314
    %p321 = scmp.eq.s32.totalorder %s31, 1
    %p322 = por %p320, %p321
    %p323 = scmp.ne.s32.totalorder %s314, %s315
    %p324 = scmp.eq.s32.totalorder %s31, 0
    %p325 = por %p323, %p324
    %p326 = scmp.ne.s32.totalorder %s314, %s315
    %p327 = scmp.eq.s32.totalorder %s32, 1
    %p328 = por %p326, %p327
    %p330 = scmp.ne.s32.totalorder %s315, %s329
    %p331 = scmp.eq.s32.totalorder %s32, 0
    %p332 = por %p330, %p331
    %s334 = sadd.s32 %s333, 1
    %p337 = scmp.eq.s32.totalorder %s26, 1
    %p338 = scmp.ne.s32.totalorder %s333, %s335
    %p339 = scmp.eq.s32.totalorder %s26, 0
    %p340 = por %p338, %p339
    %p341 = scmp.ne.s32.totalorder %s333, %s335
    %p342 = scmp.eq.s32.totalorder %s31, 1
    %p343 = por %p341, %p342
    %p344 = scmp.ne.s32.totalorder %s335, %s336
    %p345 = scmp.eq.s32.totalorder %s31, 0
    %p346 = por %p344, %p345
    %p347 = scmp.ne.s32.totalorder %s335, %s336
    %p348 = scmp.eq.s32.totalorder %s32, 1
    %p349 = por %p347, %p348
    %p351 = scmp.ne.s32.totalorder %s336, %s350
    %p352 = scmp.eq.s32.totalorder %s32, 0
    %p353 = por %p351, %p352
    %s355 = sadd.s32 %s354, 1
    %p358 = scmp.eq.s32.totalorder %s26, 1
    %p359 = scmp.ne.s32.totalorder %s354, %s356
    %p360 = scmp.eq.s32.totalorder %s26, 0
    %p361 = por %p359, %p360
    %p362 = scmp.ne.s32.totalorder %s354, %s356
    %p363 = scmp.eq.s32.totalorder %s31, 1
    %p364 = por %p362, %p363
    %p365 = scmp.ne.s32.totalorder %s356, %s357
    %p366 = scmp.eq.s32.totalorder %s31, 0
    %p367 = por %p365, %p366
    %p368 = scmp.ne.s32.totalorder %s356, %s357
    %p369 = scmp.eq.s32.totalorder %s32, 1
    %p370 = por %p368, %p369
    %p372 = scmp.ne.s32.totalorder %s357, %s371
    %p373 = scmp.eq.s32.totalorder %s32, 0
    %p374 = por %p372, %p373
    %s376 = sadd.s32 %s375, 1
    %p379 = scmp.eq.s32.totalorder %s26, 1
    %p380 = scmp.ne.s32.totalorder %s375, %s377
    %p381 = scmp.eq.s32.totalorder %s26, 0
    %p382 = por %p380, %p381
    %p383 = scmp.ne.s32.totalorder %s375, %s377
    %p384 = scmp.eq.s32.totalorder %s31, 1
    %p385 = por %p383, %p384
    %p386 = scmp.ne.s32.totalorder %s377, %s378
    %p387 = scmp.eq.s32.totalorder %s31, 0
    %p388 = por %p386, %p387
    %p389 = scmp.ne.s32.totalorder %s377, %s378
    %p390 = scmp.eq.s32.totalorder %s32, 1
    %p391 = por %p389, %p390
    %p393 = scmp.ne.s32.totalorder %s378, %s392
    %p394 = scmp.eq.s32.totalorder %s32, 0
    %p395 = por %p393, %p394
    %s396 = ssub.s32 %s26, %s33
    %p397 = scmp.eq.s32.totalorder %s396, 0
    %s399 = sadd.s32 %s398, 1
    %s400 = scalar_select %p397, %s398, %s399
    %p403 = pneg %p397
    %p404 = scmp.eq.s32.totalorder %s26, 1
    %p405 = por %p403, %p404
    %p406 = scmp.ne.s32.totalorder %s398, %s401
    %p407 = scmp.eq.s32.totalorder %s26, 0
    %p408 = por %p406, %p407
    %p409 = scmp.ne.s32.totalorder %s398, %s401
    %p410 = scmp.eq.s32.totalorder %s31, 1
    %p411 = por %p409, %p410
    %p412 = scmp.ne.s32.totalorder %s401, %s402
    %p413 = scmp.eq.s32.totalorder %s31, 0
    %p414 = por %p412, %p413
    %p415 = scmp.ne.s32.totalorder %s401, %s402
    %p416 = scmp.eq.s32.totalorder %s32, 1
    %p417 = por %p415, %p416
    %p419 = scmp.ne.s32.totalorder %s402, %s418
    %p420 = scmp.eq.s32.totalorder %s32, 0
    %p421 = por %p419, %p420
    %s422 = ssub.s32 %s26, %s33
    %p423 = scmp.eq.s32.totalorder %s422, 0
    %s425 = sadd.s32 %s424, 1
    %s426 = scalar_select %p423, %s424, %s425
    %p429 = pneg %p423
    %p430 = scmp.eq.s32.totalorder %s26, 1
    %p431 = por %p429, %p430
    %p432 = scmp.ne.s32.totalorder %s424, %s427
    %p433 = scmp.eq.s32.totalorder %s26, 0
    %p434 = por %p432, %p433
    %p435 = scmp.ne.s32.totalorder %s424, %s427
    %p436 = scmp.eq.s32.totalorder %s31, 1
    %p437 = por %p435, %p436
    %p438 = scmp.ne.s32.totalorder %s427, %s428
    %p439 = scmp.eq.s32.totalorder %s31, 0
    %p440 = por %p438, %p439
    %p441 = scmp.ne.s32.totalorder %s427, %s428
    %p442 = scmp.eq.s32.totalorder %s32, 1
    %p443 = por %p441, %p442
    %p445 = scmp.ne.s32.totalorder %s428, %s444
    %p446 = scmp.eq.s32.totalorder %s32, 0
    %p447 = por %p445, %p446
    %s448 = ssub.s32 %s26, %s33
    %p449 = scmp.eq.s32.totalorder %s448, 0
    %s451 = sadd.s32 %s450, 1
    %s452 = scalar_select %p449, %s450, %s451
    %p455 = pneg %p449
    %p456 = scmp.eq.s32.totalorder %s26, 1
    %p457 = por %p455, %p456
    %p458 = scmp.ne.s32.totalorder %s450, %s453
    %p459 = scmp.eq.s32.totalorder %s26, 0
    %p460 = por %p458, %p459
    %p461 = scmp.ne.s32.totalorder %s450, %s453
    %p462 = scmp.eq.s32.totalorder %s31, 1
    %p463 = por %p461, %p462
    %p464 = scmp.ne.s32.totalorder %s453, %s454
    %p465 = scmp.eq.s32.totalorder %s31, 0
    %p466 = por %p464, %p465
    %p467 = scmp.ne.s32.totalorder %s453, %s454
    %p468 = scmp.eq.s32.totalorder %s32, 1
    %p469 = por %p467, %p468
    %p471 = scmp.ne.s32.totalorder %s454, %s470
    %p472 = scmp.eq.s32.totalorder %s32, 0
    %p473 = por %p471, %p472
    %p474 = scmp.le.s32.totalorder 1, %s26
    %p475 = scmp.lt.s32.totalorder %s26, 3
    %p476 = pnand %p474, %p475
    %p477 = pneg %p476
    // Predicated region
    $region9: #{bert_forward.1} parent=5 // pred_check
      _
    $region10: #{bert_forward.1} parent=5 // pred_check_branch
      %479 = sbr.rel (%p476) target = $region12
    $region11: #{bert_forward.1} parent=5 // pred_region
      %s480 = ssub.s32 %s26, 1
      // Predicated region
      $region13: #{bert_forward.1} parent=11 // pred_check
        %p481 = pneg %p73
      $region14: #{bert_forward.1} parent=11 // pred_check_branch
        %483 = sbr.rel (%p481) target = $region16
      $region15: #{bert_forward.1} parent=11 // pred_region
        _
      $region16: #{bert_forward.1} parent=11 // pred_fallthru
        _
      // Predicated region
      $region17: #{bert_forward.1} parent=11 // pred_check
        %p484 = pneg %p94
      $region18: #{bert_forward.1} parent=11 // pred_check_branch
        %486 = sbr.rel (%p484) target = $region20
      $region19: #{bert_forward.1} parent=11 // pred_region
        _
      $region20: #{bert_forward.1} parent=11 // pred_fallthru
        _
      // Predicated region
      $region21: #{bert_forward.1} parent=11 // pred_check
        %p487 = pneg %p115
      $region22: #{bert_forward.1} parent=11 // pred_check_branch
        %489 = sbr.rel (%p487) target = $region24
      $region23: #{bert_forward.1} parent=11 // pred_region
        _
      $region24: #{bert_forward.1} parent=11 // pred_fallthru
        _
      // Predicated region
      $region25: #{bert_forward.1} parent=11 // pred_check
        %p490 = pneg %p136
      $region26: #{bert_forward.1} parent=11 // pred_check_branch
        %492 = sbr.rel (%p490) target = $region28
      $region27: #{bert_forward.1} parent=11 // pred_region
        _
      $region28: #{bert_forward.1} parent=11 // pred_fallthru
        _
      // Predicated region
      $region29: #{bert_forward.1} parent=11 // pred_check
        %p493 = pneg %p157
      $region30: #{bert_forward.1} parent=11 // pred_check_branch
        %495 = sbr.rel (%p493) target = $region32
      $region31: #{bert_forward.1} parent=11 // pred_region
        _
      $region32: #{bert_forward.1} parent=11 // pred_fallthru
        _
      // Predicated region
      $region33: #{bert_forward.1} parent=11 // pred_check
        %p496 = pneg %p178
      $region34: #{bert_forward.1} parent=11 // pred_check_branch
        %498 = sbr.rel (%p496) target = $region36
      $region35: #{bert_forward.1} parent=11 // pred_region
        _
      $region36: #{bert_forward.1} parent=11 // pred_fallthru
        _
      // Predicated region
      $region37: #{bert_forward.1} parent=11 // pred_check
        %p499 = pneg %p199
      $region38: #{bert_forward.1} parent=11 // pred_check_branch
        %501 = sbr.rel (%p499) target = $region40
      $region39: #{bert_forward.1} parent=11 // pred_region
        _
      $region40: #{bert_forward.1} parent=11 // pred_fallthru
        _
      // Predicated region
      $region41: #{bert_forward.1} parent=11 // pred_check
        %p502 = pneg %p220
      $region42: #{bert_forward.1} parent=11 // pred_check_branch
        %504 = sbr.rel (%p502) target = $region44
      $region43: #{bert_forward.1} parent=11 // pred_region
        _
      $region44: #{bert_forward.1} parent=11 // pred_fallthru
        _
      // Predicated region
      $region45: #{bert_forward.1} parent=11 // pred_check
        %p505 = pneg %p241
      $region46: #{bert_forward.1} parent=11 // pred_check_branch
        %507 = sbr.rel (%p505) target = $region48
      $region47: #{bert_forward.1} parent=11 // pred_region
        _
      $region48: #{bert_forward.1} parent=11 // pred_fallthru
        _
      // Predicated region
      $region49: #{bert_forward.1} parent=11 // pred_check
        %p508 = pneg %p262
      $region50: #{bert_forward.1} parent=11 // pred_check_branch
        %510 = sbr.rel (%p508) target = $region52
      $region51: #{bert_forward.1} parent=11 // pred_region
        _
      $region52: #{bert_forward.1} parent=11 // pred_fallthru
        _
      // Predicated region
      $region53: #{bert_forward.1} parent=11 // pred_check
        %p511 = pneg %p283
      $region54: #{bert_forward.1} parent=11 // pred_check_branch
        %513 = sbr.rel (%p511) target = $region56
      $region55: #{bert_forward.1} parent=11 // pred_region
        _
      $region56: #{bert_forward.1} parent=11 // pred_fallthru
        _
      // Predicated region
      $region57: #{bert_forward.1} parent=11 // pred_check
        %p514 = pneg %p304
      $region58: #{bert_forward.1} parent=11 // pred_check_branch
        %516 = sbr.rel (%p514) target = $region60
      $region59: #{bert_forward.1} parent=11 // pred_region
        _
      $region60: #{bert_forward.1} parent=11 // pred_fallthru
        _
      // Predicated region
      $region61: #{bert_forward.1} parent=11 // pred_check
        %p517 = pneg %p325
      $region62: #{bert_forward.1} parent=11 // pred_check_branch
        %519 = sbr.rel (%p517) target = $region64
      $region63: #{bert_forward.1} parent=11 // pred_region
        _
      $region64: #{bert_forward.1} parent=11 // pred_fallthru
        _
      // Predicated region
      $region65: #{bert_forward.1} parent=11 // pred_check
        %p520 = pneg %p346
      $region66: #{bert_forward.1} parent=11 // pred_check_branch
        %522 = sbr.rel (%p520) target = $region68
      $region67: #{bert_forward.1} parent=11 // pred_region
        _
      $region68: #{bert_forward.1} parent=11 // pred_fallthru
        _
      // Predicated region
      $region69: #{bert_forward.1} parent=11 // pred_check
        %p523 = pneg %p367
      $region70: #{bert_forward.1} parent=11 // pred_check_branch
        %525 = sbr.rel (%p523) target = $region72
      $region71: #{bert_forward.1} parent=11 // pred_region
        _
      $region72: #{bert_forward.1} parent=11 // pred_fallthru
        _
      // Predicated region
      $region73: #{bert_forward.1} parent=11 // pred_check
        %p526 = pneg %p388
      $region74: #{bert_forward.1} parent=11 // pred_check_branch
        %528 = sbr.rel (%p526) target = $region76
      $region75: #{bert_forward.1} parent=11 // pred_region
        _
      $region76: #{bert_forward.1} parent=11 // pred_fallthru
        _
    $region12: #{bert_forward.1} parent=5 // pred_fallthru
      _
    %p529 = scmp.lt.s32.totalorder %s26, 2
    // Predicated region
    $region77: #{bert_forward.1} parent=5 // pred_check
      %p530 = pneg %p529
    $region78: #{bert_forward.1} parent=5 // pred_check_branch
      %532 = sbr.rel (%p530) target = $region80
    $region79: #{bert_forward.1} parent=5 // pred_region
      // Predicated region
      $region81: #{bert_forward.1} parent=79 // pred_check
        %p533 = pneg %p46
      $region82: #{bert_forward.1} parent=79 // pred_check_branch
        %535 = sbr.rel (%p533) target = $region84
      $region83: #{bert_forward.1} parent=79 // pred_region
        %p536 = scmp.lt.s32.totalorder %s26, 1
        %s537 = scalar_select %p536, %s26, 1
        %s538 = smul.addr %s537, 8
        %s539 = scalar_lea.vmem %s0, %s538
      $region84: #{bert_forward.1} parent=79 // pred_fallthru
        _
      // Predicated region
      $region85: #{bert_forward.1} parent=79 // pred_check
        %p540 = pneg %p408
      $region86: #{bert_forward.1} parent=79 // pred_check_branch
        %542 = sbr.rel (%p540) target = $region88
      $region87: #{bert_forward.1} parent=79 // pred_region
        %p543 = scmp.lt.s32.totalorder %s26, 1
        %s544 = scalar_select %p543, %s26, 1
        %s545 = smul.addr %s544, 8
        %s546 = scalar_lea.vmem %s17, %s545
      $region88: #{bert_forward.1} parent=79 // pred_fallthru
        _
    $region80: #{bert_forward.1} parent=5 // pred_fallthru
      _
    %p547 = scmp.le.s32.totalorder 1, %s26
    %p548 = scmp.lt.s32.totalorder %s26, 3
    %p549 = pnand %p547, %p548
    %p550 = pneg %p549
    // Predicated region
    $region89: #{bert_forward.1} parent=5 // pred_check
      _
    $region90: #{bert_forward.1} parent=5 // pred_check_branch
      %552 = sbr.rel (%p549) target = $region92
    $region91: #{bert_forward.1} parent=5 // pred_region
      %s553 = ssub.s32 %s26, 1
      %p554 = scmp.lt.s32.totalorder %s31, 1
      %s555 = scalar_select %p554, %s31, 1
      %s556 = smul.addr %s555, 8
      %s557 = scalar_lea.vmem %s0, %s556
      %p558 = pneg %p52
      %p559 = pneg %p49
      %p560 = pneg %p73
      %p561 = pneg %p70
      %p562 = pneg %p94
      %p563 = pneg %p91
      %p564 = pneg %p115
      %p565 = pneg %p112
      %p566 = pneg %p136
      %p567 = pneg %p133
      %p568 = pneg %p157
      %p569 = pneg %p154
      %p570 = pneg %p178
      %p571 = pneg %p175
      %p572 = pneg %p199
      %p573 = pneg %p196
      %p574 = pneg %p220
      %p575 = pneg %p217
      %p576 = pneg %p241
      %p577 = pneg %p238
      %p578 = pneg %p262
      %p579 = pneg %p259
      %p580 = pneg %p283
      %p581 = pneg %p280
      %p582 = pneg %p304
      %p583 = pneg %p301
      %p584 = pneg %p325
      %p585 = pneg %p322
      %p586 = pneg %p346
      %p587 = pneg %p343
      %p588 = pneg %p367
      %p589 = pneg %p364
      %p590 = pneg %p388
      %p591 = pneg %p385
      %p592 = scmp.lt.s32.totalorder %s31, 1
      %s593 = scalar_select %p592, %s31, 1
      %s594 = smul.addr %s593, 8
      %s595 = scalar_lea.vmem %s17, %s594
      %p596 = pneg %p414
      %p597 = pneg %p411
      %p598 = pneg %p440
      %p599 = pneg %p437
      %p600 = scmp.lt.s32.totalorder %s31, 1
      %s601 = scalar_select %p600, %s31, 1
      %s602 = smul.addr %s601, 8
      %s603 = scalar_lea.vmem %s18, %s602
      %p604 = pneg %p466
      %p605 = pneg %p463
      %p606 = scmp.lt.s32.totalorder %s31, 1
      %s607 = scalar_select %p606, %s31, 1
      %s608 = scalar_lea.vmem %s19, %s607
      %p609 = scmp.lt.s32.totalorder %s31, 1
      %s610 = scalar_select %p609, %s31, 1
      %s611 = smul.addr %s610, 8
      %s612 = scalar_lea.vmem %s0, %s611
      %p613 = scmp.lt.s32.totalorder %s31, 1
      %s614 = scalar_select %p613, %s31, 1
      %s615 = smul.addr %s614, 8
      %s616 = scalar_lea.vmem %s17, %s615
      %p617 = scmp.lt.s32.totalorder %s31, 1
      %s618 = scalar_select %p617, %s31, 1
      %s619 = smul.addr %s618, 8
      %s620 = scalar_lea.vmem %s18, %s619
      %p621 = scmp.lt.s32.totalorder %s31, 1
      %s622 = scalar_select %p621, %s31, 1
      %s623 = scalar_lea.vmem %s19, %s622
      %v625 = vld [vmem:[%s612] sm:$0xff]
      %v626 = vld [vmem:[%s1] sm:$0x1]
      %v627 = vld [vmem:[%s2] sm:$0x1]
      %vm628 = vcmask 261120
      %v629 = vsel %vm628, %v625, 0.0
      %630 = vadd.xlane.f32.xlu0 %v629
      %v631 = vpop.xlane.xlu0 %630
      %v632 = vrcp.pop 32.0
      %v633 = vmul.f32 %v631, %v632
      %v634 = vsub.f32 %v625, %v633
      %v635 = vmul.f32 %v634, %v634
      %v636 = vsel %vm628, %v635, 0.0
      %637 = vadd.xlane.f32.xlu0 %v636
      %v638 = vpop.xlane.xlu0 %637
      %v639 = vmul.f32 %v638, %v632
      %v640 = vadd.f32 %v639, 1e-12
      %v641 = vrsqrt.pop %v640
      %v642 = vmul.f32 %v634, %v641
      %v644 = vlaneseq
      %v645 = vshrl.u32 %v644, 7
      %v646 = vsub.s32 0, %v645
      %v647 = vrot.slane %v626, %v646
      %v649 = vmul.f32 %v642, %v647
      %v651 = vlaneseq
      %v652 = vshrl.u32 %v651, 7
      %v653 = vsub.s32 0, %v652
      %v654 = vrot.slane %v627, %v653
      %v656 = vadd.f32 %v649, %v654
      %v657 = vld [vmem:[%s3] sm:$0xf]
      %v658 = vld [vmem:[%s3 + $0x4] sm:$0xf]
      %v659 = vld [vmem:[%s3 + $0x8] sm:$0xf]
      %v660 = vld [vmem:[%s3 + $0xc] sm:$0xf]
      %v661 = vpack.c.bf16 %v656, %v656
      %v662 = vld [vmem:[%s4] sm:$0x1]
      %v664 = vlaneseq
      %v665 = vshrl.u32 %v664, 7
      %v666 = vsub.s32 0, %v665
      %v667 = vrot.slane %v662, %v666
      %v673 = vunpack.c.l.b16 %v657
      %v674 = vunpack.c.l.b16 %v658
      %v675 = vunpack.c.l.b16 %v659
      %v676 = vunpack.c.l.b16 %v660
      %v677 = vpack.c.b16 %v674, %v673
      %v678 = vpack.c.b16 %v676, %v675
      %v682 = vsel %vm628, %v661, 0
      %684 = vmatprep.subr.bf16.mxu0 0
      %685 = vmatpush1.bf16.msra.mxu0 %v677
      %686 = vmatprep.subr.bf16.mxu0 0
      %687 = vmatpush1.bf16.msra.mxu0 %v678
      %688 = vmatprep.subr.bf16.mxu0 0
      %689 = vmatpush1.bf16.msra.mxu0 0
      %690 = vmatprep.subr.bf16.mxu0 0
      %691 = vmatpush1.bf16.msra.mxu0 0
      %692 = vmatprep.subr.bf16.mxu0 0
      %693 = vmatpush1.bf16.msra.mxu0 0
      %694 = vmatprep.subr.bf16.mxu0 0
      %695 = vmatpush1.bf16.msra.mxu0 0
      %696 = vmatprep.subr.bf16.mxu0 0
      %697 = vmatpush1.bf16.msra.mxu0 0
      %698 = vmatprep.subr.bf16.mxu0 0
      %699 = vmatpush1.bf16.msra.mxu0 0
      %700 = vmatprep.subr.bf16.mxu0 0
      %701 = vmatpush1.bf16.msra.mxu0 0
      %702 = vmatprep.subr.bf16.mxu0 0
      %703 = vmatpush1.bf16.msra.mxu0 0
      %704 = vmatprep.subr.bf16.mxu0 0
      %705 = vmatpush1.bf16.msra.mxu0 0
      %706 = vmatprep.subr.bf16.mxu0 0
      %707 = vmatpush1.bf16.msra.mxu0 0
      %708 = vmatprep.subr.bf16.mxu0 0
      %709 = vmatpush1.bf16.msra.mxu0 0
      %710 = vmatprep.subr.bf16.mxu0 0
      %711 = vmatpush1.bf16.msra.mxu0 0
      %712 = vmatprep.subr.bf16.mxu0 0
      %713 = vmatpush1.bf16.msra.mxu0 0
      %714 = vmatprep.subr.bf16.mxu0 0
      %715 = vmatpush1.bf16.msra.mxu0 0
      %716 = vmatprep.mubr.bf16.mxu0 0
      %717 = vmatmul.mubr.bf16.gmra.mrb[0].mxu0 %v682
      %v718 = vpop.f32.mrb[0].mxu0
      %v719 = vadd.f32 %v667, %v718
      %v720 = vpop.f32.mrb[0].mxu0
      %v721 = vpop.f32.mrb[0].mxu0
      %v722 = vpop.f32.mrb[0].mxu0
      %723 = vdwg.mxu0
      %v724 = vpack.c.bf16 %v719, %v719
      %v725 = vld [vmem:[%s5] sm:$0xf]
      %v726 = vld [vmem:[%s5 + $0x4] sm:$0xf]
      %v727 = vld [vmem:[%s5 + $0x8] sm:$0xf]
      %v728 = vld [vmem:[%s5 + $0xc] sm:$0xf]
      %v729 = vld [vmem:[%s6] sm:$0x1]
      %731 = vrot.lane.b32.xlu0 %v724, 96
      %v732 = vpop.permute.xlu0 %731
      %vm733 = vcmask 130048
      %v735 = vsel %vm733, %v724, 0
      %v738 = vsel %vm733, %v732, 0
      %740 = vmatprep.subr.bf16.mxu0 0
      %741 = vmatpush1.bf16.xpose.msra.mxu0 %v738
      %742 = vmatprep.subr.bf16.mxu0 0
      %743 = vmatpush1.bf16.xpose.msra.mxu0 0
      %744 = vmatprep.subr.bf16.mxu0 0
      %745 = vmatpush1.bf16.xpose.msra.mxu0 0
      %746 = vmatprep.subr.bf16.mxu0 0
      %747 = vmatpush1.bf16.xpose.msra.mxu0 0
      %748 = vmatprep.subr.bf16.mxu0 0
      %749 = vmatpush1.bf16.xpose.msra.mxu0 0
      %750 = vmatprep.subr.bf16.mxu0 0
      %751 = vmatpush1.bf16.xpose.msra.mxu0 0
      %752 = vmatprep.subr.bf16.mxu0 0
      %753 = vmatpush1.bf16.xpose.msra.mxu0 0
      %754 = vmatprep.subr.bf16.mxu0 0
      %755 = vmatpush1.bf16.xpose.msra.mxu0 0
      %756 = vmatprep.subr.bf16.mxu0 0
      %757 = vmatpush1.bf16.xpose.msra.mxu0 0
      %758 = vmatprep.subr.bf16.mxu0 0
      %759 = vmatpush1.bf16.xpose.msra.mxu0 0
      %760 = vmatprep.subr.bf16.mxu0 0
      %761 = vmatpush1.bf16.xpose.msra.mxu0 0
      %762 = vmatprep.subr.bf16.mxu0 0
      %763 = vmatpush1.bf16.xpose.msra.mxu0 0
      %764 = vmatprep.subr.bf16.mxu0 0
      %765 = vmatpush1.bf16.xpose.msra.mxu0 0
      %766 = vmatprep.subr.bf16.mxu0 0
      %767 = vmatpush1.bf16.xpose.msra.mxu0 0
      %768 = vmatprep.subr.bf16.mxu0 0
      %769 = vmatpush1.bf16.xpose.msra.mxu0 0
      %770 = vmatprep.subr.bf16.mxu0 0
      %771 = vmatpush1.bf16.xpose.msra.mxu0 0
      %772 = vmatprep.mubr.bf16.mxu0 0
      %773 = vmatmul.mubr.bf16.gmra.mrb[0].mxu0 %v735
      %v774 = vpop.f32.mrb[0].mxu0
      %v775 = vadd.f32 0.0, %v774
      %v776 = vpop.f32.mrb[0].mxu0
      %v777 = vpop.f32.mrb[0].mxu0
      %v778 = vpop.f32.mrb[0].mxu0
      %779 = vdwg.mxu0
      %v780 = vmul.f32 %v775, 0.25
      %vm781 = vcmask 64512
      %v782 = vsel %vm781, %v780, -inf
      %783 = vmax.xlane.f32.xlu0 %v782
      %v784 = vpop.xlane.xlu0 %783
      %v785 = vsub.f32 %v780, %v784
      %v786 = vmul.f32 %v785, 1.442695
      %v787 = vpow.pop %v786
      %v788 = vsel %vm781, %v787, 0.0
      %789 = vadd.xlane.f32.xlu0 %v788
      %v790 = vpop.xlane.xlu0 %789
      %v791 = vrcp.pop %v790
      %v792 = vmul.f32 %v787, %v791
      %v793 = vpack.c.bf16 %v792, %v792
      %794 = vrot.lane.b32.xlu0 %v724, 64
      %v795 = vpop.permute.xlu0 %794
      %v797 = vsel %vm781, %v793, 0
      %vm799 = vcmask 1043456
      %v801 = vsel %vm799, %v795, 0
      %803 = vmatprep.subr.bf16.mxu0 0
      %804 = vmatpush1.bf16.msra.mxu0 %v801
      %805 = vmatprep.subr.bf16.mxu0 0
      %806 = vmatpush1.bf16.msra.mxu0 0
      %807 = vmatprep.subr.bf16.mxu0 0
      %808 = vmatpush1.bf16.msra.mxu0 0
      %809 = vmatprep.subr.bf16.mxu0 0
      %810 = vmatpush1.bf16.msra.mxu0 0
      %811 = vmatprep.subr.bf16.mxu0 0
      %812 = vmatpush1.bf16.msra.mxu0 0
      %813 = vmatprep.subr.bf16.mxu0 0
      %814 = vmatpush1.bf16.msra.mxu0 0
      %815 = vmatprep.subr.bf16.mxu0 0
      %816 = vmatpush1.bf16.msra.mxu0 0
      %817 = vmatprep.subr.bf16.mxu0 0
      %818 = vmatpush1.bf16.msra.mxu0 0
      %819 = vmatprep.subr.bf16.mxu0 0
      %820 = vmatpush1.bf16.msra.mxu0 0
      %821 = vmatprep.subr.bf16.mxu0 0
      %822 = vmatpush1.bf16.msra.mxu0 0
      %823 = vmatprep.subr.bf16.mxu0 0
      %824 = vmatpush1.bf16.msra.mxu0 0
      %825 = vmatprep.subr.bf16.mxu0 0
      %826 = vmatpush1.bf16.msra.mxu0 0
      %827 = vmatprep.subr.bf16.mxu0 0
      %828 = vmatpush1.bf16.msra.mxu0 0
      %829 = vmatprep.subr.bf16.mxu0 0
      %830 = vmatpush1.bf16.msra.mxu0 0
      %831 = vmatprep.subr.bf16.mxu0 0
      %832 = vmatpush1.bf16.msra.mxu0 0
      %833 = vmatprep.subr.bf16.mxu0 0
      %834 = vmatpush1.bf16.msra.mxu0 0
      %835 = vmatprep.mubr.bf16.mxu0 0
      %836 = vmatmul.mubr.bf16.gmra.mrb[0].mxu0 %v797
      %v837 = vpop.f32.mrb[0].mxu0
      %v838 = vadd.f32 0.0, %v837
      %v839 = vpop.f32.mrb[0].mxu0
      %v840 = vpop.f32.mrb[0].mxu0
      %v841 = vpop.f32.mrb[0].mxu0
      %842 = vdwg.mxu0
      %v843 = vpack.c.bf16 %v838, %v838
      %v846 = vunpack.c.l.b16 %v725
      %v847 = vunpack.c.l.b16 %v726
      %v848 = vpack.c.b16 %v847, %v846
      %v851 = vsel %vm733, %v843, 0
      %853 = vmatprep.subr.bf16.mxu0 0
      %854 = vmatpush1.bf16.msra.mxu0 %v848
      %855 = vmatprep.subr.bf16.mxu0 0
      %856 = vmatpush1.bf16.msra.mxu0 0
      %857 = vmatprep.subr.bf16.mxu0 0
      %858 = vmatpush1.bf16.msra.mxu0 0
      %859 = vmatprep.subr.bf16.mxu0 0
      %860 = vmatpush1.bf16.msra.mxu0 0
      %861 = vmatprep.subr.bf16.mxu0 0
      %862 = vmatpush1.bf16.msra.mxu0 0
      %863 = vmatprep.subr.bf16.mxu0 0
      %864 = vmatpush1.bf16.msra.mxu0 0
      %865 = vmatprep.subr.bf16.mxu0 0
      %866 = vmatpush1.bf16.msra.mxu0 0
      %867 = vmatprep.subr.bf16.mxu0 0
      %868 = vmatpush1.bf16.msra.mxu0 0
      %869 = vmatprep.subr.bf16.mxu0 0
      %870 = vmatpush1.bf16.msra.mxu0 0
      %871 = vmatprep.subr.bf16.mxu0 0
      %872 = vmatpush1.bf16.msra.mxu0 0
      %873 = vmatprep.subr.bf16.mxu0 0
      %874 = vmatpush1.bf16.msra.mxu0 0
      %875 = vmatprep.subr.bf16.mxu0 0
      %876 = vmatpush1.bf16.msra.mxu0 0
      %877 = vmatprep.subr.bf16.mxu0 0
      %878 = vmatpush1.bf16.msra.mxu0 0
      %879 = vmatprep.subr.bf16.mxu0 0
      %880 = vmatpush1.bf16.msra.mxu0 0
      %881 = vmatprep.subr.bf16.mxu0 0
      %882 = vmatpush1.bf16.msra.mxu0 0
      %883 = vmatprep.subr.bf16.mxu0 0
      %884 = vmatpush1.bf16.msra.mxu0 0
      %885 = vmatprep.mubr.bf16.mxu0 0
      %886 = vmatmul.mubr.bf16.gmra.mrb[0].mxu0 %v851
      %v887 = vpop.f32.mrb[0].mxu0
      %v888 = vadd.f32 0.0, %v887
      %v889 = vpop.f32.mrb[0].mxu0
      %v890 = vpop.f32.mrb[0].mxu0
      %v891 = vpop.f32.mrb[0].mxu0
      %892 = vdwg.mxu0
      %v894 = vlaneseq
      %v895 = vshrl.u32 %v894, 7
      %v896 = vsub.s32 0, %v895
      %v897 = vrot.slane %v729, %v896
      %v899 = vadd.f32 %v897, %v888
      %900 = vrot.lane.b32.xlu0 %v724, 112
      %v901 = vpop.permute.xlu0 %900
      %902 = vrot.lane.b32.xlu0 %v724, 80
      %v903 = vpop.permute.xlu0 %902
      %v905 = vsel %vm733, %v901, 0
      %v908 = vsel %vm733, %v903, 0
      %910 = vmatprep.subr.bf16.mxu0 0
      %911 = vmatpush1.bf16.xpose.msra.mxu0 %v908
      %912 = vmatprep.subr.bf16.mxu0 0
      %913 = vmatpush1.bf16.xpose.msra.mxu0 0
      %914 = vmatprep.subr.bf16.mxu0 0
      %915 = vmatpush1.bf16.xpose.msra.mxu0 0
      %916 = vmatprep.subr.bf16.mxu0 0
      %917 = vmatpush1.bf16.xpose.msra.mxu0 0
      %918 = vmatprep.subr.bf16.mxu0 0
      %919 = vmatpush1.bf16.xpose.msra.mxu0 0
      %920 = vmatprep.subr.bf16.mxu0 0
      %921 = vmatpush1.bf16.xpose.msra.mxu0 0
      %922 = vmatprep.subr.bf16.mxu0 0
      %923 = vmatpush1.bf16.xpose.msra.mxu0 0
      %924 = vmatprep.subr.bf16.mxu0 0
      %925 = vmatpush1.bf16.xpose.msra.mxu0 0
      %926 = vmatprep.subr.bf16.mxu0 0
      %927 = vmatpush1.bf16.xpose.msra.mxu0 0
      %928 = vmatprep.subr.bf16.mxu0 0
      %929 = vmatpush1.bf16.xpose.msra.mxu0 0
      %930 = vmatprep.subr.bf16.mxu0 0
      %931 = vmatpush1.bf16.xpose.msra.mxu0 0
      %932 = vmatprep.subr.bf16.mxu0 0
      %933 = vmatpush1.bf16.xpose.msra.mxu0 0
      %934 = vmatprep.subr.bf16.mxu0 0
      %935 = vmatpush1.bf16.xpose.msra.mxu0 0
      %936 = vmatprep.subr.bf16.mxu0 0
      %937 = vmatpush1.bf16.xpose.msra.mxu0 0
      %938 = vmatprep.subr.bf16.mxu0 0
      %939 = vmatpush1.bf16.xpose.msra.mxu0 0
      %940 = vmatprep.subr.bf16.mxu0 0
      %941 = vmatpush1.bf16.xpose.msra.mxu0 0
      %942 = vmatprep.mubr.bf16.mxu0 0
      %943 = vmatmul.mubr.bf16.gmra.mrb[0].mxu0 %v905
      %v944 = vpop.f32.mrb[0].mxu0
      %v945 = vadd.f32 0.0, %v944
      %v946 = vpop.f32.mrb[0].mxu0
      %v947 = vpop.f32.mrb[0].mxu0
      %v948 = vpop.f32.mrb[0].mxu0
      %949 = vdwg.mxu0
      %v950 = vmul.f32 %v945, 0.25
      %v951 = vsel %vm781, %v950, -inf
      %952 = vmax.xlane.f32.xlu0 %v951
      %v953 = vpop.xlane.xlu0 %952
      %v954 = vsub.f32 %v950, %v953
      %v955 = vmul.f32 %v954, 1.442695
      %v956 = vpow.pop %v955
      %v957 = vsel %vm781, %v956, 0.0
      %958 = vadd.xlane.f32.xlu0 %v957
      %v959 = vpop.xlane.xlu0 %958
      %v960 = vrcp.pop %v959
      %v961 = vmul.f32 %v956, %v960
      %v962 = vpack.c.bf16 %v961, %v961
      %963 = vrot.lane.b32.xlu0 %v724, 48
      %v964 = vpop.permute.xlu0 %963
      %v966 = vsel %vm781, %v962, 0
      %v969 = vsel %vm799, %v964, 0
      %971 = vmatprep.subr.bf16.mxu0 0
      %972 = vmatpush1.bf16.msra.mxu0 %v969
      %973 = vmatprep.subr.bf16.mxu0 0
      %974 = vmatpush1.bf16.msra.mxu0 0
      %975 = vmatprep.subr.bf16.mxu0 0
      %976 = vmatpush1.bf16.msra.mxu0 0
      %977 = vmatprep.subr.bf16.mxu0 0
      %978 = vmatpush1.bf16.msra.mxu0 0
      %979 = vmatprep.subr.bf16.mxu0 0
      %980 = vmatpush1.bf16.msra.mxu0 0
      %981 = vmatprep.subr.bf16.mxu0 0
      %982 = vmatpush1.bf16.msra.mxu0 0
      %983 = vmatprep.subr.bf16.mxu0 0
      %984 = vmatpush1.bf16.msra.mxu0 0
      %985 = vmatprep.subr.bf16.mxu0 0
      %986 = vmatpush1.bf16.msra.mxu0 0
      %987 = vmatprep.subr.bf16.mxu0 0
      %988 = vmatpush1.bf16.msra.mxu0 0
      %989 = vmatprep.subr.bf16.mxu0 0
      %990 = vmatpush1.bf16.msra.mxu0 0
      %991 = vmatprep.subr.bf16.mxu0 0
      %992 = vmatpush1.bf16.msra.mxu0 0
      %993 = vmatprep.subr.bf16.mxu0 0
      %994 = vmatpush1.bf16.msra.mxu0 0
      %995 = vmatprep.subr.bf16.mxu0 0
      %996 = vmatpush1.bf16.msra.mxu0 0
      %997 = vmatprep.subr.bf16.mxu0 0
      %998 = vmatpush1.bf16.msra.mxu0 0
      %999 = vmatprep.subr.bf16.mxu0 0
      %1000 = vmatpush1.bf16.msra.mxu0 0
      %1001 = vmatprep.subr.bf16.mxu0 0
      %1002 = vmatpush1.bf16.msra.mxu0 0
      %1003 = vmatprep.mubr.bf16.mxu0 0
      %1004 = vmatmul.mubr.bf16.gmra.mrb[0].mxu0 %v966
      %v1005 = vpop.f32.mrb[0].mxu0
      %v1006 = vadd.f32 0.0, %v1005
      %v1007 = vpop.f32.mrb[0].mxu0
      %v1008 = vpop.f32.mrb[0].mxu0
      %v1009 = vpop.f32.mrb[0].mxu0
      %1010 = vdwg.mxu0
      %v1011 = vpack.c.bf16 %v1006, %v1006
      %v1014 = vunpack.c.l.b16 %v727
      %v1015 = vunpack.c.l.b16 %v728
      %v1016 = vpack.c.b16 %v1015, %v1014
      %v1019 = vsel %vm733, %v1011, 0
      %1021 = vmatprep.subr.bf16.mxu0 0
      %1022 = vmatpush1.bf16.msra.mxu0 %v1016
      %1023 = vmatprep.subr.bf16.mxu0 0
      %1024 = vmatpush1.bf16.msra.mxu0 0
      %1025 = vmatprep.subr.bf16.mxu0 0
      %1026 = vmatpush1.bf16.msra.mxu0 0
      %1027 = vmatprep.subr.bf16.mxu0 0
      %1028 = vmatpush1.bf16.msra.mxu0 0
      %1029 = vmatprep.subr.bf16.mxu0 0
      %1030 = vmatpush1.bf16.msra.mxu0 0
      %1031 = vmatprep.subr.bf16.mxu0 0
      %1032 = vmatpush1.bf16.msra.mxu0 0
      %1033 = vmatprep.subr.bf16.mxu0 0
      %1034 = vmatpush1.bf16.msra.mxu0 0
      %1035 = vmatprep.subr.bf16.mxu0 0
      %1036 = vmatpush1.bf16.msra.mxu0 0
      %1037 = vmatprep.subr.bf16.mxu0 0
      %1038 = vmatpush1.bf16.msra.mxu0 0
      %1039 = vmatprep.subr.bf16.mxu0 0
      %1040 = vmatpush1.bf16.msra.mxu0 0
      %1041 = vmatprep.subr.bf16.mxu0 0
      %1042 = vmatpush1.bf16.msra.mxu0 0
      %1043 = vmatprep.subr.bf16.mxu0 0
      %1044 = vmatpush1.bf16.msra.mxu0 0
      %1045 = vmatprep.subr.bf16.mxu0 0
      %1046 = vmatpush1.bf16.msra.mxu0 0
      %1047 = vmatprep.subr.bf16.mxu0 0
      %1048 = vmatpush1.bf16.msra.mxu0 0
      %1049 = vmatprep.subr.bf16.mxu0 0
      %1050 = vmatpush1.bf16.msra.mxu0 0
      %1051 = vmatprep.subr.bf16.mxu0 0
      %1052 = vmatpush1.bf16.msra.mxu0 0
      %1053 = vmatprep.mubr.bf16.mxu0 0
      %1054 = vmatmul.mubr.bf16.gmra.mrb[0].mxu0 %v1019
      %v1055 = vpop.f32.mrb[0].mxu0
      %v1056 = vadd.f32 0.0, %v1055
      %v1057 = vpop.f32.mrb[0].mxu0
      %v1058 = vpop.f32.mrb[0].mxu0
      %v1059 = vpop.f32.mrb[0].mxu0
      %1060 = vdwg.mxu0
      %v1061 = vadd.f32 %v899, %v1056
      %v1062 = vadd.f32 %v656, %v1061
      %v1063 = vld [vmem:[%s7] sm:$0x1]
      %v1064 = vld [vmem:[%s8] sm:$0x1]
      %v1065 = vsel %vm628, %v1062, 0.0
      %1066 = vadd.xlane.f32.xlu0 %v1065
      %v1067 = vpop.xlane.xlu0 %1066
      %v1068 = vmul.f32 %v1067, %v632
      %v1069 = vsub.f32 %v1062, %v1068
      %v1070 = vmul.f32 %v1069, %v1069
      %v1071 = vsel %vm628, %v1070, 0.0
      %1072 = vadd.xlane.f32.xlu0 %v1071
      %v1073 = vpop.xlane.xlu0 %1072
      %v1074 = vmul.f32 %v1073, %v632
      %v1075 = vadd.f32 %v1074, 1e-12
      %v1076 = vrsqrt.pop %v1075
      %v1077 = vmul.f32 %v1069, %v1076
      %v1079 = vlaneseq
      %v1080 = vshrl.u32 %v1079, 7
      %v1081 = vsub.s32 0, %v1080
      %v1082 = vrot.slane %v1063, %v1081
      %v1084 = vmul.f32 %v1077, %v1082
      %v1086 = vlaneseq
      %v1087 = vshrl.u32 %v1086, 7
      %v1088 = vsub.s32 0, %v1087
      %v1089 = vrot.slane %v1064, %v1088
      %v1091 = vadd.f32 %v1084, %v1089
      %v1092 = vld [vmem:[%s9] sm:$0xf]
      %v1093 = vld [vmem:[%s9 + $0x4] sm:$0xf]
      %v1094 = vld [vmem:[%s9 + $0x8] sm:$0xf]
      %v1095 = vld [vmem:[%s9 + $0xc] sm:$0xf]
      %v1096 = vpack.c.bf16 %v1091, %v1091
      %v1097 = vld [vmem:[%s10] sm:$0x1]
      %v1099 = vlaneseq
      %v1100 = vshrl.u32 %v1099, 7
      %v1101 = vsub.s32 0, %v1100
      %v1102 = vrot.slane %v1097, %v1101
      %v1108 = vunpack.c.l.b16 %v1092
      %v1109 = vunpack.c.l.b16 %v1093
      %v1110 = vunpack.c.l.b16 %v1094
      %v1111 = vunpack.c.l.b16 %v1095
      %v1112 = vpack.c.b16 %v1109, %v1108
      %v1113 = vpack.c.b16 %v1111, %v1110
      %v1117 = vsel %vm628, %v1096, 0
      %1119 = vmatprep.subr.bf16.mxu0 0
      %1120 = vmatpush1.bf16.msra.mxu0 %v1112
      %1121 = vmatprep.subr.bf16.mxu0 0
      %1122 = vmatpush1.bf16.msra.mxu0 %v1113
      %1123 = vmatprep.subr.bf16.mxu0 0
      %1124 = vmatpush1.bf16.msra.mxu0 0
      %1125 = vmatprep.subr.bf16.mxu0 0
      %1126 = vmatpush1.bf16.msra.mxu0 0
      %1127 = vmatprep.subr.bf16.mxu0 0
      %1128 = vmatpush1.bf16.msra.mxu0 0
      %1129 = vmatprep.subr.bf16.mxu0 0
      %1130 = vmatpush1.bf16.msra.mxu0 0
      %1131 = vmatprep.subr.bf16.mxu0 0
      %1132 = vmatpush1.bf16.msra.mxu0 0
      %1133 = vmatprep.subr.bf16.mxu0 0
      %1134 = vmatpush1.bf16.msra.mxu0 0
      %1135 = vmatprep.subr.bf16.mxu0 0
      %1136 = vmatpush1.bf16.msra.mxu0 0
      %1137 = vmatprep.subr.bf16.mxu0 0
      %1138 = vmatpush1.bf16.msra.mxu0 0
      %1139 = vmatprep.subr.bf16.mxu0 0
      %1140 = vmatpush1.bf16.msra.mxu0 0
      %1141 = vmatprep.subr.bf16.mxu0 0
      %1142 = vmatpush1.bf16.msra.mxu0 0
      %1143 = vmatprep.subr.bf16.mxu0 0
      %1144 = vmatpush1.bf16.msra.mxu0 0
      %1145 = vmatprep.subr.bf16.mxu0 0
      %1146 = vmatpush1.bf16.msra.mxu0 0
      %1147 = vmatprep.subr.bf16.mxu0 0
      %1148 = vmatpush1.bf16.msra.mxu0 0
      %1149 = vmatprep.subr.bf16.mxu0 0
      %1150 = vmatpush1.bf16.msra.mxu0 0
      %1151 = vmatprep.mubr.bf16.mxu0 0
      %1152 = vmatmul.mubr.bf16.gmra.mrb[0].mxu0 %v1117
      %v1153 = vpop.f32.mrb[0].mxu0
      %v1154 = vadd.f32 %v1102, %v1153
      %v1155 = vpop.f32.mrb[0].mxu0
      %v1156 = vpop.f32.mrb[0].mxu0
      %v1157 = vpop.f32.mrb[0].mxu0
      %1158 = vdwg.mxu0
      %v1159 = vmul.f32 %v1154, %v1154
      %v1160 = vmul.f32 %v1154, %v1159
      %v1161 = vmul.f32 %v1160, 0.044715
      %v1162 = vadd.f32 %v1154, %v1161
      %v1163 = vmul.f32 %v1162, 0.7978846
      %v1164 = vtanh.pop %v1163
      %v1165 = vadd.f32 %v1164, 1.0
      %v1166 = vmul.f32 %v1165, 0.5
      %v1167 = vmul.f32 %v1154, %v1166
      %v1168 = vld [vmem:[%s11] sm:$0xf]
      %v1169 = vld [vmem:[%s11 + $0x4] sm:$0xf]
      %v1170 = vld [vmem:[%s11 + $0x8] sm:$0xf]
      %v1171 = vld [vmem:[%s11 + $0xc] sm:$0xf]
      %v1172 = vld [vmem:[%s11 + $0x10] sm:$0xf]
      %v1173 = vld [vmem:[%s11 + $0x14] sm:$0xf]
      %v1174 = vld [vmem:[%s11 + $0x18] sm:$0xf]
      %v1175 = vld [vmem:[%s11 + $0x1c] sm:$0xf]
      %v1176 = vpack.c.bf16 %v1167, %v1167
      %v1177 = vld [vmem:[%s12] sm:$0x1]
      %v1179 = vlaneseq
      %v1180 = vshrl.u32 %v1179, 7
      %v1181 = vsub.s32 0, %v1180
      %v1182 = vrot.slane %v1177, %v1181
      %v1192 = vunpack.c.l.b16 %v1168
      %v1193 = vunpack.c.l.b16 %v1169
      %v1194 = vunpack.c.l.b16 %v1170
      %v1195 = vunpack.c.l.b16 %v1171
      %v1196 = vunpack.c.l.b16 %v1172
      %v1197 = vunpack.c.l.b16 %v1173
      %v1198 = vunpack.c.l.b16 %v1174
      %v1199 = vunpack.c.l.b16 %v1175
      %v1200 = vpack.c.b16 %v1193, %v1192
      %v1201 = vpack.c.b16 %v1195, %v1194
      %v1202 = vpack.c.b16 %v1197, %v1196
      %v1203 = vpack.c.b16 %v1199, %v1198
      %vm1208 = vcmask 523264
      %v1210 = vsel %vm1208, %v1176, 0
      %1212 = vmatprep.subr.bf16.mxu0 0
      %1213 = vmatpush1.bf16.msra.mxu0 %v1200
      %1214 = vmatprep.subr.bf16.mxu0 0
      %1215 = vmatpush1.bf16.msra.mxu0 %v1201
      %1216 = vmatprep.subr.bf16.mxu0 0
      %1217 = vmatpush1.bf16.msra.mxu0 %v1202
      %1218 = vmatprep.subr.bf16.mxu0 0
      %1219 = vmatpush1.bf16.msra.mxu0 %v1203
      %1220 = vmatprep.subr.bf16.mxu0 0
      %1221 = vmatpush1.bf16.msra.mxu0 0
      %1222 = vmatprep.subr.bf16.mxu0 0
      %1223 = vmatpush1.bf16.msra.mxu0 0
      %1224 = vmatprep.subr.bf16.mxu0 0
      %1225 = vmatpush1.bf16.msra.mxu0 0
      %1226 = vmatprep.subr.bf16.mxu0 0
      %1227 = vmatpush1.bf16.msra.mxu0 0
      %1228 = vmatprep.subr.bf16.mxu0 0
      %1229 = vmatpush1.bf16.msra.mxu0 0
      %1230 = vmatprep.subr.bf16.mxu0 0
      %1231 = vmatpush1.bf16.msra.mxu0 0
      %1232 = vmatprep.subr.bf16.mxu0 0
      %1233 = vmatpush1.bf16.msra.mxu0 0
      %1234 = vmatprep.subr.bf16.mxu0 0
      %1235 = vmatpush1.bf16.msra.mxu0 0
      %1236 = vmatprep.subr.bf16.mxu0 0
      %1237 = vmatpush1.bf16.msra.mxu0 0
      %1238 = vmatprep.subr.bf16.mxu0 0
      %1239 = vmatpush1.bf16.msra.mxu0 0
      %1240 = vmatprep.subr.bf16.mxu0 0
      %1241 = vmatpush1.bf16.msra.mxu0 0
      %1242 = vmatprep.subr.bf16.mxu0 0
      %1243 = vmatpush1.bf16.msra.mxu0 0
      %1244 = vmatprep.mubr.bf16.mxu0 0
      %1245 = vmatmul.mubr.bf16.gmra.mrb[0].mxu0 %v1210
      %v1246 = vpop.f32.mrb[0].mxu0
      %v1247 = vadd.f32 %v1182, %v1246
      %v1248 = vpop.f32.mrb[0].mxu0
      %v1249 = vpop.f32.mrb[0].mxu0
      %v1250 = vpop.f32.mrb[0].mxu0
      %1251 = vdwg.mxu0
      %v1252 = vadd.f32 %v1091, %v1247
      %v1253 = vld [vmem:[%s13] sm:$0x1]
      %v1254 = vld [vmem:[%s14] sm:$0x1]
      %v1255 = vsel %vm628, %v1252, 0.0
      %1256 = vadd.xlane.f32.xlu0 %v1255
      %v1257 = vpop.xlane.xlu0 %1256
      %v1258 = vmul.f32 %v1257, %v632
      %v1259 = vsub.f32 %v1252, %v1258
      %v1260 = vmul.f32 %v1259, %v1259
      %v1261 = vsel %vm628, %v1260, 0.0
      %1262 = vadd.xlane.f32.xlu0 %v1261
      %v1263 = vpop.xlane.xlu0 %1262
      %v1264 = vmul.f32 %v1263, %v632
      %v1265 = vadd.f32 %v1264, 1e-12
      %v1266 = vrsqrt.pop %v1265
      %v1267 = vmul.f32 %v1259, %v1266
      %v1269 = vlaneseq
      %v1270 = vshrl.u32 %v1269, 7
      %v1271 = vsub.s32 0, %v1270
      %v1272 = vrot.slane %v1253, %v1271
      %v1274 = vmul.f32 %v1267, %v1272
      %v1276 = vlaneseq
      %v1277 = vshrl.u32 %v1276, 7
      %v1278 = vsub.s32 0, %v1277
      %v1279 = vrot.slane %v1254, %v1278
      %v1281 = vadd.f32 %v1274, %v1279
      %s1282 = scalar_lea.vmem %s3, 16
      %v1283 = vld [vmem:[%s1282] sm:$0xf]
      %v1284 = vld [vmem:[%s1282 + $0x4] sm:$0xf]
      %v1285 = vld [vmem:[%s1282 + $0x8] sm:$0xf]
      %v1286 = vld [vmem:[%s1282 + $0xc] sm:$0xf]
      %v1287 = vpack.c.bf16 %v1281, %v1281
      %s1288 = scalar_lea.vmem %s4, 1
      %v1289 = vld [vmem:[%s1288] sm:$0x1]
      %v1291 = vlaneseq
      %v1292 = vshrl.u32 %v1291, 7
      %v1293 = vsub.s32 0, %v1292
      %v1294 = vrot.slane %v1289, %v1293
      %v1300 = vunpack.c.l.b16 %v1283
      %v1301 = vunpack.c.l.b16 %v1284
      %v1302 = vunpack.c.l.b16 %v1285
      %v1303 = vunpack.c.l.b16 %v1286
      %v1304 = vpack.c.b16 %v1301, %v1300
      %v1305 = vpack.c.b16 %v1303, %v1302
      %v1309 = vsel %vm628, %v1287, 0
      %1311 = vmatprep.subr.bf16.mxu0 0
      %1312 = vmatpush1.bf16.msra.mxu0 %v1304
      %1313 = vmatprep.subr.bf16.mxu0 0
      %1314 = vmatpush1.bf16.msra.mxu0 %v1305
      %1315 = vmatprep.subr.bf16.mxu0 0
      %1316 = vmatpush1.bf16.msra.mxu0 0
      %1317 = vmatprep.subr.bf16.mxu0 0
      %1318 = vmatpush1.bf16.msra.mxu0 0
      %1319 = vmatprep.subr.bf16.mxu0 0
      %1320 = vmatpush1.bf16.msra.mxu0 0
      %1321 = vmatprep.subr.bf16.mxu0 0
      %1322 = vmatpush1.bf16.msra.mxu0 0
      %1323 = vmatprep.subr.bf16.mxu0 0
      %1324 = vmatpush1.bf16.msra.mxu0 0
      %1325 = vmatprep.subr.bf16.mxu0 0
      %1326 = vmatpush1.bf16.msra.mxu0 0
      %1327 = vmatprep.subr.bf16.mxu0 0
      %1328 = vmatpush1.bf16.msra.mxu0 0
      %1329 = vmatprep.subr.bf16.mxu0 0
      %1330 = vmatpush1.bf16.msra.mxu0 0
      %1331 = vmatprep.subr.bf16.mxu0 0
      %1332 = vmatpush1.bf16.msra.mxu0 0
      %1333 = vmatprep.subr.bf16.mxu0 0
      %1334 = vmatpush1.bf16.msra.mxu0 0
      %1335 = vmatprep.subr.bf16.mxu0 0
      %1336 = vmatpush1.bf16.msra.mxu0 0
      %1337 = vmatprep.subr.bf16.mxu0 0
      %1338 = vmatpush1.bf16.msra.mxu0 0
      %1339 = vmatprep.subr.bf16.mxu0 0
      %1340 = vmatpush1.bf16.msra.mxu0 0
      %1341 = vmatprep.subr.bf16.mxu0 0
      %1342 = vmatpush1.bf16.msra.mxu0 0
      %1343 = vmatprep.mubr.bf16.mxu0 0
      %1344 = vmatmul.mubr.bf16.gmra.mrb[0].mxu0 %v1309
      %v1345 = vpop.f32.mrb[0].mxu0
      %v1346 = vadd.f32 %v1294, %v1345
      %v1347 = vpop.f32.mrb[0].mxu0
      %v1348 = vpop.f32.mrb[0].mxu0
      %v1349 = vpop.f32.mrb[0].mxu0
      %1350 = vdwg.mxu0
      %v1351 = vpack.c.bf16 %v1346, %v1346
      %s1352 = scalar_lea.vmem %s5, 16
      %v1353 = vld [vmem:[%s1352] sm:$0xf]
      %v1354 = vld [vmem:[%s1352 + $0x4] sm:$0xf]
      %v1355 = vld [vmem:[%s1352 + $0x8] sm:$0xf]
      %v1356 = vld [vmem:[%s1352 + $0xc] sm:$0xf]
      %s1357 = scalar_lea.vmem %s6, 1
      %v1358 = vld [vmem:[%s1357] sm:$0x1]
      %1360 = vrot.lane.b32.xlu0 %v1351, 96
      %v1361 = vpop.permute.xlu0 %1360
      %v1363 = vsel %vm733, %v1351, 0
      %v1366 = vsel %vm733, %v1361, 0
      %1368 = vmatprep.subr.bf16.mxu0 0
      %1369 = vmatpush1.bf16.xpose.msra.mxu0 %v1366
      %1370 = vmatprep.subr.bf16.mxu0 0
      %1371 = vmatpush1.bf16.xpose.msra.mxu0 0
      %1372 = vmatprep.subr.bf16.mxu0 0
      %1373 = vmatpush1.bf16.xpose.msra.mxu0 0
      %1374 = vmatprep.subr.bf16.mxu0 0
      %1375 = vmatpush1.bf16.xpose.msra.mxu0 0
      %1376 = vmatprep.subr.bf16.mxu0 0
      %1377 = vmatpush1.bf16.xpose.msra.mxu0 0
      %1378 = vmatprep.subr.bf16.mxu0 0
      %1379 = vmatpush1.bf16.xpose.msra.mxu0 0
      %1380 = vmatprep.subr.bf16.mxu0 0
      %1381 = vmatpush1.bf16.xpose.msra.mxu0 0
      %1382 = vmatprep.subr.bf16.mxu0 0
      %1383 = vmatpush1.bf16.xpose.msra.mxu0 0
      %1384 = vmatprep.subr.bf16.mxu0 0
      %1385 = vmatpush1.bf16.xpose.msra.mxu0 0
      %1386 = vmatprep.subr.bf16.mxu0 0
      %1387 = vmatpush1.bf16.xpose.msra.mxu0 0
      %1388 = vmatprep.subr.bf16.mxu0 0
      %1389 = vmatpush1.bf16.xpose.msra.mxu0 0
      %1390 = vmatprep.subr.bf16.mxu0 0
      %1391 = vmatpush1.bf16.xpose.msra.mxu0 0
      %1392 = vmatprep.subr.bf16.mxu0 0
      %1393 = vmatpush1.bf16.xpose.msra.mxu0 0
      %1394 = vmatprep.subr.bf16.mxu0 0
      %1395 = vmatpush1.bf16.xpose.msra.mxu0 0
      %1396 = vmatprep.subr.bf16.mxu0 0
      %1397 = vmatpush1.bf16.xpose.msra.mxu0 0
      %1398 = vmatprep.subr.bf16.mxu0 0
      %1399 = vmatpush1.bf16.xpose.msra.mxu0 0
      %1400 = vmatprep.mubr.bf16.mxu0 0
      %1401 = vmatmul.mubr.bf16.gmra.mrb[0].mxu0 %v1363
      %v1402 = vpop.f32.mrb[0].mxu0
      %v1403 = vadd.f32 0.0, %v1402
      %v1404 = vpop.f32.mrb[0].mxu0
      %v1405 = vpop.f32.mrb[0].mxu0
      %v1406 = vpop.f32.mrb[0].mxu0
      %1407 = vdwg.mxu0
      %v1408 = vmul.f32 %v1403, 0.25
      %v1409 = vsel %vm781, %v1408, -inf
      %1410 = vmax.xlane.f32.xlu0 %v1409
      %v1411 = vpop.xlane.xlu0 %1410
      %v1412 = vsub.f32 %v1408, %v1411
      %v1413 = vmul.f32 %v1412, 1.442695
      %v1414 = vpow.pop %v1413
      %v1415 = vsel %vm781, %v1414, 0.0
      %1416 = vadd.xlane.f32.xlu0 %v1415
      %v1417 = vpop.xlane.xlu0 %1416
      %v1418 = vrcp.pop %v1417
      %v1419 = vmul.f32 %v1414, %v1418
      %v1420 = vpack.c.bf16 %v1419, %v1419
      %1421 = vrot.lane.b32.xlu0 %v1351, 64
      %v1422 = vpop.permute.xlu0 %1421
      %v1424 = vsel %vm781, %v1420, 0
      %v1427 = vsel %vm799, %v1422, 0
      %1429 = vmatprep.subr.bf16.mxu0 0
      %1430 = vmatpush1.bf16.msra.mxu0 %v1427
      %1431 = vmatprep.subr.bf16.mxu0 0
      %1432 = vmatpush1.bf16.msra.mxu0 0
      %1433 = vmatprep.subr.bf16.mxu0 0
      %1434 = vmatpush1.bf16.msra.mxu0 0
      %1435 = vmatprep.subr.bf16.mxu0 0
      %1436 = vmatpush1.bf16.msra.mxu0 0
      %1437 = vmatprep.subr.bf16.mxu0 0
      %1438 = vmatpush1.bf16.msra.mxu0 0
      %1439 = vmatprep.subr.bf16.mxu0 0
      %1440 = vmatpush1.bf16.msra.mxu0 0
      %1441 = vmatprep.subr.bf16.mxu0 0
      %1442 = vmatpush1.bf16.msra.mxu0 0
      %1443 = vmatprep.subr.bf16.mxu0 0
      %1444 = vmatpush1.bf16.msra.mxu0 0
      %1445 = vmatprep.subr.bf16.mxu0 0
      %1446 = vmatpush1.bf16.msra.mxu0 0
      %1447 = vmatprep.subr.bf16.mxu0 0
      %1448 = vmatpush1.bf16.msra.mxu0 0
      %1449 = vmatprep.subr.bf16.mxu0 0
      %1450 = vmatpush1.bf16.msra.mxu0 0
      %1451 = vmatprep.subr.bf16.mxu0 0
      %1452 = vmatpush1.bf16.msra.mxu0 0
      %1453 = vmatprep.subr.bf16.mxu0 0
      %1454 = vmatpush1.bf16.msra.mxu0 0
      %1455 = vmatprep.subr.bf16.mxu0 0
      %1456 = vmatpush1.bf16.msra.mxu0 0
      %1457 = vmatprep.subr.bf16.mxu0 0
      %1458 = vmatpush1.bf16.msra.mxu0 0
      %1459 = vmatprep.subr.bf16.mxu0 0
      %1460 = vmatpush1.bf16.msra.mxu0 0
      %1461 = vmatprep.mubr.bf16.mxu0 0
      %1462 = vmatmul.mubr.bf16.gmra.mrb[0].mxu0 %v1424
      %v1463 = vpop.f32.mrb[0].mxu0
      %v1464 = vadd.f32 0.0, %v1463
      %v1465 = vpop.f32.mrb[0].mxu0
      %v1466 = vpop.f32.mrb[0].mxu0
      %v1467 = vpop.f32.mrb[0].mxu0
      %1468 = vdwg.mxu0
      %v1469 = vpack.c.bf16 %v1464, %v1464
      %v1472 = vunpack.c.l.b16 %v1353
      %v1473 = vunpack.c.l.b16 %v1354
      %v1474 = vpack.c.b16 %v1473, %v1472
      %v1477 = vsel %vm733, %v1469, 0
      %1479 = vmatprep.subr.bf16.mxu0 0
      %1480 = vmatpush1.bf16.msra.mxu0 %v1474
      %1481 = vmatprep.subr.bf16.mxu0 0
      %1482 = vmatpush1.bf16.msra.mxu0 0
      %1483 = vmatprep.subr.bf16.mxu0 0
      %1484 = vmatpush1.bf16.msra.mxu0 0
      %1485 = vmatprep.subr.bf16.mxu0 0
      %1486 = vmatpush1.bf16.msra.mxu0 0
      %1487 = vmatprep.subr.bf16.mxu0 0
      %1488 = vmatpush1.bf16.msra.mxu0 0
      %1489 = vmatprep.subr.bf16.mxu0 0
      %1490 = vmatpush1.bf16.msra.mxu0 0
      %1491 = vmatprep.subr.bf16.mxu0 0
      %1492 = vmatpush1.bf16.msra.mxu0 0
      %1493 = vmatprep.subr.bf16.mxu0 0
      %1494 = vmatpush1.bf16.msra.mxu0 0
      %1495 = vmatprep.subr.bf16.mxu0 0
      %1496 = vmatpush1.bf16.msra.mxu0 0
      %1497 = vmatprep.subr.bf16.mxu0 0
      %1498 = vmatpush1.bf16.msra.mxu0 0
      %1499 = vmatprep.subr.bf16.mxu0 0
      %1500 = vmatpush1.bf16.msra.mxu0 0
      %1501 = vmatprep.subr.bf16.mxu0 0
      %1502 = vmatpush1.bf16.msra.mxu0 0
      %1503 = vmatprep.subr.bf16.mxu0 0
      %1504 = vmatpush1.bf16.msra.mxu0 0
      %1505 = vmatprep.subr.bf16.mxu0 0
      %1506 = vmatpush1.bf16.msra.mxu0 0
      %1507 = vmatprep.subr.bf16.mxu0 0
      %1508 = vmatpush1.bf16.msra.mxu0 0
      %1509 = vmatprep.subr.bf16.mxu0 0
      %1510 = vmatpush1.bf16.msra.mxu0 0
      %1511 = vmatprep.mubr.bf16.mxu0 0
      %1512 = vmatmul.mubr.bf16.gmra.mrb[0].mxu0 %v1477
      %v1513 = vpop.f32.mrb[0].mxu0
      %v1514 = vadd.f32 0.0, %v1513
      %v1515 = vpop.f32.mrb[0].mxu0
      %v1516 = vpop.f32.mrb[0].mxu0
      %v1517 = vpop.f32.mrb[0].mxu0
      %1518 = vdwg.mxu0
      %v1520 = vlaneseq
      %v1521 = vshrl.u32 %v1520, 7
      %v1522 = vsub.s32 0, %v1521
      %v1523 = vrot.slane %v1358, %v1522
      %v1525 = vadd.f32 %v1523, %v1514
      %1526 = vrot.lane.b32.xlu0 %v1351, 112
      %v1527 = vpop.permute.xlu0 %1526
      %1528 = vrot.lane.b32.xlu0 %v1351, 80
      %v1529 = vpop.permute.xlu0 %1528
      %v1531 = vsel %vm733, %v1527, 0
      %v1534 = vsel %vm733, %v1529, 0
      %1536 = vmatprep.subr.bf16.mxu0 0
      %1537 = vmatpush1.bf16.xpose.msra.mxu0 %v1534
      %1538 = vmatprep.subr.bf16.mxu0 0
      %1539 = vmatpush1.bf16.xpose.msra.mxu0 0
      %1540 = vmatprep.subr.bf16.mxu0 0
      %1541 = vmatpush1.bf16.xpose.msra.mxu0 0
      %1542 = vmatprep.subr.bf16.mxu0 0
      %1543 = vmatpush1.bf16.xpose.msra.mxu0 0
      %1544 = vmatprep.subr.bf16.mxu0 0
      %1545 = vmatpush1.bf16.xpose.msra.mxu0 0
      %1546 = vmatprep.subr.bf16.mxu0 0
      %1547 = vmatpush1.bf16.xpose.msra.mxu0 0
      %1548 = vmatprep.subr.bf16.mxu0 0
      %1549 = vmatpush1.bf16.xpose.msra.mxu0 0
      %1550 = vmatprep.subr.bf16.mxu0 0
      %1551 = vmatpush1.bf16.xpose.msra.mxu0 0
      %1552 = vmatprep.subr.bf16.mxu0 0
      %1553 = vmatpush1.bf16.xpose.msra.mxu0 0
      %1554 = vmatprep.subr.bf16.mxu0 0
      %1555 = vmatpush1.bf16.xpose.msra.mxu0 0
      %1556 = vmatprep.subr.bf16.mxu0 0
      %1557 = vmatpush1.bf16.xpose.msra.mxu0 0
      %1558 = vmatprep.subr.bf16.mxu0 0
      %1559 = vmatpush1.bf16.xpose.msra.mxu0 0
      %1560 = vmatprep.subr.bf16.mxu0 0
      %1561 = vmatpush1.bf16.xpose.msra.mxu0 0
      %1562 = vmatprep.subr.bf16.mxu0 0
      %1563 = vmatpush1.bf16.xpose.msra.mxu0 0
      %1564 = vmatprep.subr.bf16.mxu0 0
      %1565 = vmatpush1.bf16.xpose.msra.mxu0 0
      %1566 = vmatprep.subr.bf16.mxu0 0
      %1567 = vmatpush1.bf16.xpose.msra.mxu0 0
      %1568 = vmatprep.mubr.bf16.mxu0 0
      %1569 = vmatmul.mubr.bf16.gmra.mrb[0].mxu0 %v1531
      %v1570 = vpop.f32.mrb[0].mxu0
      %v1571 = vadd.f32 0.0, %v1570
      %v1572 = vpop.f32.mrb[0].mxu0
      %v1573 = vpop.f32.mrb[0].mxu0
      %v1574 = vpop.f32.mrb[0].mxu0
      %1575 = vdwg.mxu0
      %v1576 = vmul.f32 %v1571, 0.25
      %v1577 = vsel %vm781, %v1576, -inf
      %1578 = vmax.xlane.f32.xlu0 %v1577
      %v1579 = vpop.xlane.xlu0 %1578
      %v1580 = vsub.f32 %v1576, %v1579
      %v1581 = vmul.f32 %v1580, 1.442695
      %v1582 = vpow.pop %v1581
      %v1583 = vsel %vm781, %v1582, 0.0
      %1584 = vadd.xlane.f32.xlu0 %v1583
      %v1585 = vpop.xlane.xlu0 %1584
      %v1586 = vrcp.pop %v1585
      %v1587 = vmul.f32 %v1582, %v1586
      %v1588 = vpack.c.bf16 %v1587, %v1587
      %1589 = vrot.lane.b32.xlu0 %v1351, 48
      %v1590 = vpop.permute.xlu0 %1589
      %v1592 = vsel %vm781, %v1588, 0
      %v1595 = vsel %vm799, %v1590, 0
      %1597 = vmatprep.subr.bf16.mxu0 0
      %1598 = vmatpush1.bf16.msra.mxu0 %v1595
      %1599 = vmatprep.subr.bf16.mxu0 0
      %1600 = vmatpush1.bf16.msra.mxu0 0
      %1601 = vmatprep.subr.bf16.mxu0 0
      %1602 = vmatpush1.bf16.msra.mxu0 0
      %1603 = vmatprep.subr.bf16.mxu0 0
      %1604 = vmatpush1.bf16.msra.mxu0 0
      %1605 = vmatprep.subr.bf16.mxu0 0
      %1606 = vmatpush1.bf16.msra.mxu0 0
      %1607 = vmatprep.subr.bf16.mxu0 0
      %1608 = vmatpush1.bf16.msra.mxu0 0
      %1609 = vmatprep.subr.bf16.mxu0 0
      %1610 = vmatpush1.bf16.msra.mxu0 0
      %1611 = vmatprep.subr.bf16.mxu0 0
      %1612 = vmatpush1.bf16.msra.mxu0 0
      %1613 = vmatprep.subr.bf16.mxu0 0
      %1614 = vmatpush1.bf16.msra.mxu0 0
      %1615 = vmatprep.subr.bf16.mxu0 0
      %1616 = vmatpush1.bf16.msra.mxu0 0
      %1617 = vmatprep.subr.bf16.mxu0 0
      %1618 = vmatpush1.bf16.msra.mxu0 0
      %1619 = vmatprep.subr.bf16.mxu0 0
      %1620 = vmatpush1.bf16.msra.mxu0 0
      %1621 = vmatprep.subr.bf16.mxu0 0
      %1622 = vmatpush1.bf16.msra.mxu0 0
      %1623 = vmatprep.subr.bf16.mxu0 0
      %1624 = vmatpush1.bf16.msra.mxu0 0
      %1625 = vmatprep.subr.bf16.mxu0 0
      %1626 = vmatpush1.bf16.msra.mxu0 0
      %1627 = vmatprep.subr.bf16.mxu0 0
      %1628 = vmatpush1.bf16.msra.mxu0 0
      %1629 = vmatprep.mubr.bf16.mxu0 0
      %1630 = vmatmul.mubr.bf16.gmra.mrb[0].mxu0 %v1592
      %v1631 = vpop.f32.mrb[0].mxu0
      %v1632 = vadd.f32 0.0, %v1631
      %v1633 = vpop.f32.mrb[0].mxu0
      %v1634 = vpop.f32.mrb[0].mxu0
      %v1635 = vpop.f32.mrb[0].mxu0
      %1636 = vdwg.mxu0
      %v1637 = vpack.c.bf16 %v1632, %v1632
      %v1640 = vunpack.c.l.b16 %v1355
      %v1641 = vunpack.c.l.b16 %v1356
      %v1642 = vpack.c.b16 %v1641, %v1640
      %v1645 = vsel %vm733, %v1637, 0
      %1647 = vmatprep.subr.bf16.mxu0 0
      %1648 = vmatpush1.bf16.msra.mxu0 %v1642
      %1649 = vmatprep.subr.bf16.mxu0 0
      %1650 = vmatpush1.bf16.msra.mxu0 0
      %1651 = vmatprep.subr.bf16.mxu0 0
      %1652 = vmatpush1.bf16.msra.mxu0 0
      %1653 = vmatprep.subr.bf16.mxu0 0
      %1654 = vmatpush1.bf16.msra.mxu0 0
      %1655 = vmatprep.subr.bf16.mxu0 0
      %1656 = vmatpush1.bf16.msra.mxu0 0
      %1657 = vmatprep.subr.bf16.mxu0 0
      %1658 = vmatpush1.bf16.msra.mxu0 0
      %1659 = vmatprep.subr.bf16.mxu0 0
      %1660 = vmatpush1.bf16.msra.mxu0 0
      %1661 = vmatprep.subr.bf16.mxu0 0
      %1662 = vmatpush1.bf16.msra.mxu0 0
      %1663 = vmatprep.subr.bf16.mxu0 0
      %1664 = vmatpush1.bf16.msra.mxu0 0
      %1665 = vmatprep.subr.bf16.mxu0 0
      %1666 = vmatpush1.bf16.msra.mxu0 0
      %1667 = vmatprep.subr.bf16.mxu0 0
      %1668 = vmatpush1.bf16.msra.mxu0 0
      %1669 = vmatprep.subr.bf16.mxu0 0
      %1670 = vmatpush1.bf16.msra.mxu0 0
      %1671 = vmatprep.subr.bf16.mxu0 0
      %1672 = vmatpush1.bf16.msra.mxu0 0
      %1673 = vmatprep.subr.bf16.mxu0 0
      %1674 = vmatpush1.bf16.msra.mxu0 0
      %1675 = vmatprep.subr.bf16.mxu0 0
      %1676 = vmatpush1.bf16.msra.mxu0 0
      %1677 = vmatprep.subr.bf16.mxu0 0
      %1678 = vmatpush1.bf16.msra.mxu0 0
      %1679 = vmatprep.mubr.bf16.mxu0 0
      %1680 = vmatmul.mubr.bf16.gmra.mrb[0].mxu0 %v1645
      %v1681 = vpop.f32.mrb[0].mxu0
      %v1682 = vadd.f32 0.0, %v1681
      %v1683 = vpop.f32.mrb[0].mxu0
      %v1684 = vpop.f32.mrb[0].mxu0
      %v1685 = vpop.f32.mrb[0].mxu0
      %1686 = vdwg.mxu0
      %v1687 = vadd.f32 %v1525, %v1682
      %v1688 = vadd.f32 %v1281, %v1687
      %s1689 = scalar_lea.vmem %s7, 1
      %v1690 = vld [vmem:[%s1689] sm:$0x1]
      %s1691 = scalar_lea.vmem %s8, 1
      %v1692 = vld [vmem:[%s1691] sm:$0x1]
      %v1693 = vsel %vm628, %v1688, 0.0
      %1694 = vadd.xlane.f32.xlu0 %v1693
      %v1695 = vpop.xlane.xlu0 %1694
      %v1696 = vmul.f32 %v1695, %v632
      %v1697 = vsub.f32 %v1688, %v1696
      %v1698 = vmul.f32 %v1697, %v1697
      %v1699 = vsel %vm628, %v1698, 0.0
      %1700 = vadd.xlane.f32.xlu0 %v1699
      %v1701 = vpop.xlane.xlu0 %1700
      %v1702 = vmul.f32 %v1701, %v632
      %v1703 = vadd.f32 %v1702, 1e-12
      %v1704 = vrsqrt.pop %v1703
      %v1705 = vmul.f32 %v1697, %v1704
      %v1707 = vlaneseq
      %v1708 = vshrl.u32 %v1707, 7
      %v1709 = vsub.s32 0, %v1708
      %v1710 = vrot.slane %v1690, %v1709
      %v1712 = vmul.f32 %v1705, %v1710
      %v1714 = vlaneseq
      %v1715 = vshrl.u32 %v1714, 7
      %v1716 = vsub.s32 0, %v1715
      %v1717 = vrot.slane %v1692, %v1716
      %v1719 = vadd.f32 %v1712, %v1717
      %s1720 = scalar_lea.vmem %s9, 16
      %v1721 = vld [vmem:[%s1720] sm:$0xf]
      %v1722 = vld [vmem:[%s1720 + $0x4] sm:$0xf]
      %v1723 = vld [vmem:[%s1720 + $0x8] sm:$0xf]
      %v1724 = vld [vmem:[%s1720 + $0xc] sm:$0xf]
      %v1725 = vpack.c.bf16 %v1719, %v1719
      %s1726 = scalar_lea.vmem %s10, 1
      %v1727 = vld [vmem:[%s1726] sm:$0x1]
      %v1729 = vlaneseq
      %v1730 = vshrl.u32 %v1729, 7
      %v1731 = vsub.s32 0, %v1730
      %v1732 = vrot.slane %v1727, %v1731
      %v1738 = vunpack.c.l.b16 %v1721
      %v1739 = vunpack.c.l.b16 %v1722
      %v1740 = vunpack.c.l.b16 %v1723
      %v1741 = vunpack.c.l.b16 %v1724
      %v1742 = vpack.c.b16 %v1739, %v1738
      %v1743 = vpack.c.b16 %v1741, %v1740
      %v1747 = vsel %vm628, %v1725, 0
      %1749 = vmatprep.subr.bf16.mxu0 0
      %1750 = vmatpush1.bf16.msra.mxu0 %v1742
      %1751 = vmatprep.subr.bf16.mxu0 0
      %1752 = vmatpush1.bf16.msra.mxu0 %v1743
      %1753 = vmatprep.subr.bf16.mxu0 0
      %1754 = vmatpush1.bf16.msra.mxu0 0
      %1755 = vmatprep.subr.bf16.mxu0 0
      %1756 = vmatpush1.bf16.msra.mxu0 0
      %1757 = vmatprep.subr.bf16.mxu0 0
      %1758 = vmatpush1.bf16.msra.mxu0 0
      %1759 = vmatprep.subr.bf16.mxu0 0
      %1760 = vmatpush1.bf16.msra.mxu0 0
      %1761 = vmatprep.subr.bf16.mxu0 0
      %1762 = vmatpush1.bf16.msra.mxu0 0
      %1763 = vmatprep.subr.bf16.mxu0 0
      %1764 = vmatpush1.bf16.msra.mxu0 0
      %1765 = vmatprep.subr.bf16.mxu0 0
      %1766 = vmatpush1.bf16.msra.mxu0 0
      %1767 = vmatprep.subr.bf16.mxu0 0
      %1768 = vmatpush1.bf16.msra.mxu0 0
      %1769 = vmatprep.subr.bf16.mxu0 0
      %1770 = vmatpush1.bf16.msra.mxu0 0
      %1771 = vmatprep.subr.bf16.mxu0 0
      %1772 = vmatpush1.bf16.msra.mxu0 0
      %1773 = vmatprep.subr.bf16.mxu0 0
      %1774 = vmatpush1.bf16.msra.mxu0 0
      %1775 = vmatprep.subr.bf16.mxu0 0
      %1776 = vmatpush1.bf16.msra.mxu0 0
      %1777 = vmatprep.subr.bf16.mxu0 0
      %1778 = vmatpush1.bf16.msra.mxu0 0
      %1779 = vmatprep.subr.bf16.mxu0 0
      %1780 = vmatpush1.bf16.msra.mxu0 0
      %1781 = vmatprep.mubr.bf16.mxu0 0
      %1782 = vmatmul.mubr.bf16.gmra.mrb[0].mxu0 %v1747
      %v1783 = vpop.f32.mrb[0].mxu0
      %v1784 = vadd.f32 %v1732, %v1783
      %v1785 = vpop.f32.mrb[0].mxu0
      %v1786 = vpop.f32.mrb[0].mxu0
      %v1787 = vpop.f32.mrb[0].mxu0
      %1788 = vdwg.mxu0
      %v1789 = vmul.f32 %v1784, %v1784
      %v1790 = vmul.f32 %v1784, %v1789
      %v1791 = vmul.f32 %v1790, 0.044715
      %v1792 = vadd.f32 %v1784, %v1791
      %v1793 = vmul.f32 %v1792, 0.7978846
      %v1794 = vtanh.pop %v1793
      %v1795 = vadd.f32 %v1794, 1.0
      %v1796 = vmul.f32 %v1795, 0.5
      %v1797 = vmul.f32 %v1784, %v1796
      %s1798 = scalar_lea.vmem %s11, 32
      %v1799 = vld [vmem:[%s1798] sm:$0xf]
      %v1800 = vld [vmem:[%s1798 + $0x4] sm:$0xf]
      %v1801 = vld [vmem:[%s1798 + $0x8] sm:$0xf]
      %v1802 = vld [vmem:[%s1798 + $0xc] sm:$0xf]
      %v1803 = vld [vmem:[%s1798 + $0x10] sm:$0xf]
      %v1804 = vld [vmem:[%s1798 + $0x14] sm:$0xf]
      %v1805 = vld [vmem:[%s1798 + $0x18] sm:$0xf]
      %v1806 = vld [vmem:[%s1798 + $0x1c] sm:$0xf]
      %v1807 = vpack.c.bf16 %v1797, %v1797
      %s1808 = scalar_lea.vmem %s12, 1
      %v1809 = vld [vmem:[%s1808] sm:$0x1]
      %v1811 = vlaneseq
      %v1812 = vshrl.u32 %v1811, 7
      %v1813 = vsub.s32 0, %v1812
      %v1814 = vrot.slane %v1809, %v1813
      %v1824 = vunpack.c.l.b16 %v1799
      %v1825 = vunpack.c.l.b16 %v1800
      %v1826 = vunpack.c.l.b16 %v1801
      %v1827 = vunpack.c.l.b16 %v1802
      %v1828 = vunpack.c.l.b16 %v1803
      %v1829 = vunpack.c.l.b16 %v1804
      %v1830 = vunpack.c.l.b16 %v1805
      %v1831 = vunpack.c.l.b16 %v1806
      %v1832 = vpack.c.b16 %v1825, %v1824
      %v1833 = vpack.c.b16 %v1827, %v1826
      %v1834 = vpack.c.b16 %v1829, %v1828
      %v1835 = vpack.c.b16 %v1831, %v1830
      %v1841 = vsel %vm1208, %v1807, 0
      %1843 = vmatprep.subr.bf16.mxu0 0
      %1844 = vmatpush1.bf16.msra.mxu0 %v1832
      %1845 = vmatprep.subr.bf16.mxu0 0
      %1846 = vmatpush1.bf16.msra.mxu0 %v1833
      %1847 = vmatprep.subr.bf16.mxu0 0
      %1848 = vmatpush1.bf16.msra.mxu0 %v1834
      %1849 = vmatprep.subr.bf16.mxu0 0
      %1850 = vmatpush1.bf16.msra.mxu0 %v1835
      %1851 = vmatprep.subr.bf16.mxu0 0
      %1852 = vmatpush1.bf16.msra.mxu0 0
      %1853 = vmatprep.subr.bf16.mxu0 0
      %1854 = vmatpush1.bf16.msra.mxu0 0
      %1855 = vmatprep.subr.bf16.mxu0 0
      %1856 = vmatpush1.bf16.msra.mxu0 0
      %1857 = vmatprep.subr.bf16.mxu0 0
      %1858 = vmatpush1.bf16.msra.mxu0 0
      %1859 = vmatprep.subr.bf16.mxu0 0
      %1860 = vmatpush1.bf16.msra.mxu0 0
      %1861 = vmatprep.subr.bf16.mxu0 0
      %1862 = vmatpush1.bf16.msra.mxu0 0
      %1863 = vmatprep.subr.bf16.mxu0 0
      %1864 = vmatpush1.bf16.msra.mxu0 0
      %1865 = vmatprep.subr.bf16.mxu0 0
      %1866 = vmatpush1.bf16.msra.mxu0 0
      %1867 = vmatprep.subr.bf16.mxu0 0
      %1868 = vmatpush1.bf16.msra.mxu0 0
      %1869 = vmatprep.subr.bf16.mxu0 0
      %1870 = vmatpush1.bf16.msra.mxu0 0
      %1871 = vmatprep.subr.bf16.mxu0 0
      %1872 = vmatpush1.bf16.msra.mxu0 0
      %1873 = vmatprep.subr.bf16.mxu0 0
      %1874 = vmatpush1.bf16.msra.mxu0 0
      %1875 = vmatprep.mubr.bf16.mxu0 0
      %1876 = vmatmul.mubr.bf16.gmra.mrb[0].mxu0 %v1841
      %v1877 = vpop.f32.mrb[0].mxu0
      %v1878 = vadd.f32 %v1814, %v1877
      %v1879 = vpop.f32.mrb[0].mxu0
      %v1880 = vpop.f32.mrb[0].mxu0
      %v1881 = vpop.f32.mrb[0].mxu0
      %1882 = vdwg.mxu0
      %v1883 = vadd.f32 %v1719, %v1878
      %s1884 = scalar_lea.vmem %s13, 1
      %v1885 = vld [vmem:[%s1884] sm:$0x1]
      %s1886 = scalar_lea.vmem %s14, 1
      %v1887 = vld [vmem:[%s1886] sm:$0x1]
      %v1888 = vsel %vm628, %v1883, 0.0
      %1889 = vadd.xlane.f32.xlu0 %v1888
      %v1890 = vpop.xlane.xlu0 %1889
      %v1891 = vmul.f32 %v1890, %v632
      %v1892 = vsub.f32 %v1883, %v1891
      %v1893 = vmul.f32 %v1892, %v1892
      %v1894 = vsel %vm628, %v1893, 0.0
      %1895 = vadd.xlane.f32.xlu0 %v1894
      %v1896 = vpop.xlane.xlu0 %1895
      %v1897 = vmul.f32 %v1896, %v632
      %v1898 = vadd.f32 %v1897, 1e-12
      %v1899 = vrsqrt.pop %v1898
      %v1900 = vmul.f32 %v1892, %v1899
      %v1902 = vlaneseq
      %v1903 = vshrl.u32 %v1902, 7
      %v1904 = vsub.s32 0, %v1903
      %v1905 = vrot.slane %v1885, %v1904
      %v1907 = vmul.f32 %v1900, %v1905
      %v1909 = vlaneseq
      %v1910 = vshrl.u32 %v1909, 7
      %v1911 = vsub.s32 0, %v1910
      %v1912 = vrot.slane %v1887, %v1911
      %v1914 = vadd.f32 %v1907, %v1912
      %v1915 = vld [vmem:[%s15] sm:$0xf]
      %v1916 = vld [vmem:[%s15 + $0x4] sm:$0xf]
      %v1917 = vld [vmem:[%s15 + $0x8] sm:$0xf]
      %v1918 = vld [vmem:[%s15 + $0xc] sm:$0xf]
      %v1919 = vpack.c.bf16 %v1914, %v1914
      %v1920 = vld [vmem:[%s16] sm:$0x1]
      %v1922 = vlaneseq
      %v1923 = vshrl.u32 %v1922, 7
      %v1924 = vsub.s32 0, %v1923
      %v1925 = vrot.slane %v1920, %v1924
      %v1931 = vunpack.c.l.b16 %v1915
      %v1932 = vunpack.c.l.b16 %v1916
      %v1933 = vunpack.c.l.b16 %v1917
      %v1934 = vunpack.c.l.b16 %v1918
      %v1935 = vpack.c.b16 %v1932, %v1931
      %v1936 = vpack.c.b16 %v1934, %v1933
      %v1940 = vsel %vm628, %v1919, 0
      %1942 = vmatprep.subr.bf16.mxu0 0
      %1943 = vmatpush1.bf16.msra.mxu0 %v1935
      %1944 = vmatprep.subr.bf16.mxu0 0
      %1945 = vmatpush1.bf16.msra.mxu0 %v1936
      %1946 = vmatprep.subr.bf16.mxu0 0
      %1947 = vmatpush1.bf16.msra.mxu0 0
      %1948 = vmatprep.subr.bf16.mxu0 0
      %1949 = vmatpush1.bf16.msra.mxu0 0
      %1950 = vmatprep.subr.bf16.mxu0 0
      %1951 = vmatpush1.bf16.msra.mxu0 0
      %1952 = vmatprep.subr.bf16.mxu0 0
      %1953 = vmatpush1.bf16.msra.mxu0 0
      %1954 = vmatprep.subr.bf16.mxu0 0
      %1955 = vmatpush1.bf16.msra.mxu0 0
      %1956 = vmatprep.subr.bf16.mxu0 0
      %1957 = vmatpush1.bf16.msra.mxu0 0
      %1958 = vmatprep.subr.bf16.mxu0 0
      %1959 = vmatpush1.bf16.msra.mxu0 0
      %1960 = vmatprep.subr.bf16.mxu0 0
      %1961 = vmatpush1.bf16.msra.mxu0 0
      %1962 = vmatprep.subr.bf16.mxu0 0
      %1963 = vmatpush1.bf16.msra.mxu0 0
      %1964 = vmatprep.subr.bf16.mxu0 0
      %1965 = vmatpush1.bf16.msra.mxu0 0
      %1966 = vmatprep.subr.bf16.mxu0 0
      %1967 = vmatpush1.bf16.msra.mxu0 0
      %1968 = vmatprep.subr.bf16.mxu0 0
      %1969 = vmatpush1.bf16.msra.mxu0 0
      %1970 = vmatprep.subr.bf16.mxu0 0
      %1971 = vmatpush1.bf16.msra.mxu0 0
      %1972 = vmatprep.subr.bf16.mxu0 0
      %1973 = vmatpush1.bf16.msra.mxu0 0
      %1974 = vmatprep.mubr.bf16.mxu0 0
      %1975 = vmatmul.mubr.bf16.gmra.mrb[0].mxu0 %v1940
      %v1976 = vpop.f32.mrb[0].mxu0
      %v1977 = vadd.f32 %v1925, %v1976
      %v1978 = vpop.f32.mrb[0].mxu0
      %v1979 = vpop.f32.mrb[0].mxu0
      %v1980 = vpop.f32.mrb[0].mxu0
      %1981 = vdwg.mxu0
      %1982 = vst [vmem:[%s620] sm:$0xff] %v1977
      %v1983 = vlaneseq
      %v1984 = vand.u32 %v1983, 127
      %vm1985 = vcmp.lt.s32.totalorder %v1984, 5
      %v1986 = vsel %vm1985, %v1977, -1e+30
      %1987 = vmax.xlane.f32.xlu0 %v1986
      %v1988 = vpop.xlane.xlu0 %1987
      %v1989 = vsub.f32 %v1986, %v1988
      %v1990 = vmul.f32 %v1989, 1.442695
      %v1991 = vpow.pop %v1990
      %1992 = vadd.xlane.f32.xlu0 %v1991
      %v1993 = vpop.xlane.xlu0 %1992
      %v1994 = vlog2.pop %v1993
      %v1995 = vmul.f32 %v1994, 0.6931472
      %v1996 = vadd.f32 %v1995, %v1988
      %v1997 = vld [vmem:[%s616] sm:$0xff]
      %1998 = vset.pattern.permute.xlu0 0
      %1999 = vperm.xlu0 %1998, %v1997
      %v2000 = vpop.permute.xlu0 %1999
      %vm2001 = vcmp.eq.s32.totalorder %v1984, %v2000
      %v2002 = vsel %vm2001, 1, 0
      %v2003 = vcvt.s32.f32 %v2002
      %v2004 = vsub.f32 %v1986, %v1996
      %v2005 = vmul.f32 %v2003, %v2004
      %2006 = vadd.xlane.f32.xlu0 %v2005
      %v2007 = vpop.xlane.xlu0 %2006
      %v2008 = vsub.f32 0.0, %v2007
      %v2009 = vrot.slane %v2008, 4
      %v2010 = vadd.f32 %v2008, %v2009
      %v2011 = vrot.slane %v2010, 2
      %v2012 = vadd.f32 %v2010, %v2011
      %v2013 = vrot.slane %v2012, 1
      %v2014 = vadd.f32 %v2012, %v2013
      %vm2015 = vcmask 0
      %2016 = vst.msk [vmem:[%s623] sm:$0x1] %vm2015, %v2014
      %p2017 = scmp.lt.s32.totalorder %s31, 1
      %s2018 = scalar_select %p2017, %s31, 1
      %s2019 = smul.addr %s2018, 8
      %s2020 = scalar_lea.vmem %s18, %s2019
      %p2021 = scmp.lt.s32.totalorder %s31, 1
      %s2022 = scalar_select %p2021, %s31, 1
      %s2023 = scalar_lea.vmem %s19, %s2022
      // Predicated region
      $region93: #{bert_forward.1} parent=91 // pred_check
        %p2024 = pneg %p437
      $region94: #{bert_forward.1} parent=91 // pred_check_branch
        %2026 = sbr.rel (%p2024) target = $region96
      $region95: #{bert_forward.1} parent=91 // pred_region
        _
      $region96: #{bert_forward.1} parent=91 // pred_fallthru
        _
      // Predicated region
      $region97: #{bert_forward.1} parent=91 // pred_check
        %p2027 = pneg %p463
      $region98: #{bert_forward.1} parent=91 // pred_check_branch
        %2029 = sbr.rel (%p2027) target = $region100
      $region99: #{bert_forward.1} parent=91 // pred_region
        _
      $region100: #{bert_forward.1} parent=91 // pred_fallthru
        _
    $region92: #{bert_forward.1} parent=5 // pred_fallthru
      _
    %p2030 = scmp.le.s32.totalorder 2, %s26
    // Predicated region
    $region101: #{bert_forward.1} parent=5 // pred_check
      %p2031 = pneg %p2030
    $region102: #{bert_forward.1} parent=5 // pred_check_branch
      %2033 = sbr.rel (%p2031) target = $region104
    $region103: #{bert_forward.1} parent=5 // pred_region
      %s2034 = ssub.s32 %s26, 2
      // Predicated region
      $region105: #{bert_forward.1} parent=103 // pred_check
        %p2035 = pneg %p443
      $region106: #{bert_forward.1} parent=103 // pred_check_branch
        %2037 = sbr.rel (%p2035) target = $region108
      $region107: #{bert_forward.1} parent=103 // pred_region
        %p2038 = scmp.lt.s32.totalorder %s32, 1
        %s2039 = scalar_select %p2038, %s32, 1
        %s2040 = smul.addr %s2039, 8
        %s2041 = scalar_lea.vmem %s18, %s2040
      $region108: #{bert_forward.1} parent=103 // pred_fallthru
        _
      // Predicated region
      $region109: #{bert_forward.1} parent=103 // pred_check
        %p2042 = pneg %p469
      $region110: #{bert_forward.1} parent=103 // pred_check_branch
        %2044 = sbr.rel (%p2042) target = $region112
      $region111: #{bert_forward.1} parent=103 // pred_region
        %p2045 = scmp.lt.s32.totalorder %s32, 1
        %s2046 = scalar_select %p2045, %s32, 1
        %s2047 = scalar_lea.vmem %s19, %s2046
      $region112: #{bert_forward.1} parent=103 // pred_fallthru
        _
    $region104: #{bert_forward.1} parent=5 // pred_fallthru
      _
  $region6: #{bert_forward.1} parent=0 // loop_footer
    %s30 = sadd.s32 1, %s26
  $region7: #{bert_forward.1} parent=0 // loop_footer_branch
    %25 = sbr.rel target = $region3
  $region8: #{bert_forward.1} parent=0 // loop_exit
    _

</llo_original>
